<compile_context>
chip_gen: v5e
topology: v5e:2x2
jax: 0.10.0
libtpu: 0.0.40
codegen_flags: <defaults>
</compile_context>

<pallas_src>
import math
import functools

import jax
import jax.numpy as jnp
from jax.experimental import pallas as pl
from jax.experimental.pallas import tpu as pltpu

LANE = 128
SUBLANE = 8


def _round_up(x, m):
    return (x + m - 1) // m * m


def _pad2d(a, rows, cols):
    return jnp.pad(a, ((0, rows - a.shape[0]), (0, cols - a.shape[1])))


def _soft_actor_kernel(n_hidden, a_pad, log_std_min, log_std_max, *refs):
    """Fused SoftActorNetwork forward on one batch tile.

    refs = (x_ref, w0, b0, ..., w_{n-1}, b_{n-1}, w_heads, b_heads, mean_ref, log_std_ref)

    Hidden layers: relu(h @ W + b).
    Fused heads (one lane-dense matmul of width 2*a_pad):
      mean    = y[:, :a_pad]
      log_std = log_std_min + (log_std_max - log_std_min) * (tanh(y[:, a_pad:]) + 1) / 2
    """
    x_ref = refs[0]
    mean_ref = refs[-2]
    log_std_ref = refs[-1]
    p = refs[1:-2]

    h = x_ref[...]
    for li in range(n_hidden):
        w = p[2 * li][...]
        b = p[2 * li + 1][...]
        h = jnp.maximum(jnp.dot(h, w, preferred_element_type=jnp.float32) + b, 0.0)

    w_heads = p[2 * n_hidden][...]
    b_heads = p[2 * n_hidden + 1][...]
    y = jnp.dot(h, w_heads, preferred_element_type=jnp.float32) + b_heads

    # mean head (no activation)
    mean_ref[...] = y[:, :a_pad].astype(mean_ref.dtype)
    # log_std head: tanh + affine rescale into [log_std_min, log_std_max]
    t = jnp.tanh(y[:, a_pad:])
    log_std = log_std_min + (log_std_max - log_std_min) * (t + 1.0) * 0.5
    log_std_ref[...] = log_std.astype(log_std_ref.dtype)


def soft_actor_forward(x, hidden_params, mean_params, log_std_params,
                       log_std_min=-20.0, log_std_max=2.0, batch_tile=256):
    """x: (batch, state); params are (W, b) with W (in, out), b (1, out).

    Returns (mean, log_std), each (batch, action_size), matching the PyTorch module.
    """
    batch, state_size = x.shape
    action_size = mean_params[0].shape[1]
    n_hidden = len(hidden_params)

    # ---- pad feature dims to lane width (128) so all ops/stores are lane-dense ----
    s_pad = _round_up(state_size, LANE)
    h_pads = [_round_up(w.shape[1], LANE) for (w, _) in hidden_params]
    a_pad = _round_up(action_size, LANE)

    in_dims = [s_pad] + h_pads[:-1]
    padded = []
    for (w, b), d_in, d_out in zip(hidden_params, in_dims, h_pads):
        padded.append(_pad2d(w, d_in, d_out))
        padded.append(_pad2d(b, 1, d_out))

    # Fuse mean / log_std heads into a single (H_pad, 2*a_pad) matmul.
    wm, bm = mean_params
    ws, bs = log_std_params
    padded.append(jnp.concatenate([_pad2d(wm, h_pads[-1], a_pad),
                                   _pad2d(ws, h_pads[-1], a_pad)], axis=1))
    padded.append(jnp.concatenate([_pad2d(bm, 1, a_pad),
                                   _pad2d(bs, 1, a_pad)], axis=1))

    # ---- batch tiling (parallel grid) ----
    tb = batch_tile
    if batch < tb:
        tb = max(SUBLANE, _round_up(batch, SUBLANE))
    b_pad = _round_up(batch, tb)
    x_p = jnp.pad(x, ((0, b_pad - batch), (0, s_pad - state_size)))
    grid = (b_pad // tb,)

    in_specs = [pl.BlockSpec((tb, s_pad), lambda i: (i, 0))]
    for arr in padded:
        # constant index_map -> weights/biases stay resident in VMEM across batch tiles
        in_specs.append(pl.BlockSpec(arr.shape, lambda i: (0, 0)))

    out_specs = (pl.BlockSpec((tb, a_pad), lambda i: (i, 0)),
                 pl.BlockSpec((tb, a_pad), lambda i: (i, 0)))
    out_shape = (jax.ShapeDtypeStruct((b_pad, a_pad), jnp.float32),
                 jax.ShapeDtypeStruct((b_pad, a_pad), jnp.float32))

    # ---- explicit VMEM budget (portable to v7x's 64 MiB / 32 MiB scoped default) ----
    param_bytes = sum(int(a.size) * 4 for a in padded)
    tile_bytes = (tb * s_pad + 2 * tb * a_pad) * 4        # x tile + two output tiles
    vmem_limit = int(min(2 * (param_bytes + tile_bytes) + (8 << 20), 48 << 20))

    kernel = functools.partial(_soft_actor_kernel, n_hidden, a_pad,
                               float(log_std_min), float(log_std_max))
    mean_p, log_std_p = pl.pallas_call(
        kernel,
        out_shape=out_shape,
        grid=grid,
        in_specs=in_specs,
        out_specs=out_specs,
        compiler_params=pltpu.CompilerParams(
            dimension_semantics=("parallel",),
            vmem_limit_bytes=vmem_limit),
    )(x_p, *padded)

    return mean_p[:batch, :action_size], log_std_p[:batch, :action_size]


def init_linear(key, fan_in, fan_out):
    """PyTorch nn.Linear default init (uniform +-1/sqrt(fan_in)); W stored as (in, out)."""
    kw, kb = jax.random.split(key)
    bound = 1.0 / math.sqrt(fan_in)
    w = jax.random.uniform(kw, (fan_in, fan_out), jnp.float32, -bound, bound)
    b = jax.random.uniform(kb, (1, fan_out), jnp.float32, -bound, bound)
    return w, b


def init_head(key, fan_in, fan_out, init_w=0.003):
    """Matches the module's mean_output / log_std_output init (uniform +-init_w)."""
    kw, kb = jax.random.split(key)
    w = jax.random.uniform(kw, (fan_in, fan_out), jnp.float32, -init_w, init_w)
    b = jax.random.uniform(kb, (1, fan_out), jnp.float32, -init_w, init_w)
    return w, b


def reference_forward(x, hidden_params, mean_params, log_std_params,
                      log_std_min=-20.0, log_std_max=2.0):
    h = x
    for (w, b) in hidden_params:
        h = jnp.maximum(h @ w + b, 0.0)
    mean = h @ mean_params[0] + mean_params[1]
    log_std = jnp.tanh(h @ log_std_params[0] + log_std_params[1])
    log_std = log_std_min + (log_std_max - log_std_min) * (log_std + 1.0) / 2.0
    return mean, log_std


if __name__ == "__main__":
    # Shapes consistent with the module; batch raised to 512 so the parallel batch
    # grid (tile=256 -> 2 steps) is actually exercised and dispatch cost is amortized.
    batch = 512
    state_size = 16
    hidden_layers_size = [32, 32]
    action_size = 4
    log_std_min, log_std_max = -20.0, 2.0

    key = jax.random.PRNGKey(0)
    keys = jax.random.split(key, len(hidden_layers_size) + 3)

    hidden_params = []
    sizes = [state_size] + hidden_layers_size
    for i in range(len(hidden_layers_size)):
        hidden_params.append(init_linear(keys[i], sizes[i], sizes[i + 1]))
    mean_params = init_head(keys[-3], hidden_layers_size[-1], action_size)
    log_std_params = init_head(keys[-2], hidden_layers_size[-1], action_size)

    x = jax.random.normal(keys[-1], (batch, state_size), jnp.float32)

    mean, log_std = soft_actor_forward(
        x, hidden_params, mean_params, log_std_params,
        log_std_min=log_std_min, log_std_max=log_std_max, batch_tile=256)
    mean = jax.block_until_ready(mean)
    log_std = jax.block_until_ready(log_std)

    mean_ref, log_std_ref = reference_forward(
        x, hidden_params, mean_params, log_std_params,
        log_std_min=log_std_min, log_std_max=log_std_max)

    assert mean.shape == (batch, action_size)
    assert log_std.shape == (batch, action_size)
    assert jnp.allclose(mean, mean_ref, atol=1e-5, rtol=1e-5)
    assert jnp.allclose(log_std, log_std_ref, atol=1e-5, rtol=1e-5)

    # TODO(synk): evaluate()/select_action() Normal sampling + log_prob are host/JAX-side
    # stochastic utilities outside forward(); not implemented in the kernel.
    print("KERNEL_OK")
</pallas_src>

<mosaic_0001>
module attributes {stable_mosaic.version = 11 : i64} {
  func.func @_soft_actor_kernel(%arg0: i32, %arg1: memref<256x128xf32, #tpu.memory_space<vmem>>, %arg2: memref<128x128xf32, #tpu.memory_space<vmem>>, %arg3: memref<1x128xf32, #tpu.memory_space<vmem>>, %arg4: memref<128x128xf32, #tpu.memory_space<vmem>>, %arg5: memref<1x128xf32, #tpu.memory_space<vmem>>, %arg6: memref<128x256xf32, #tpu.memory_space<vmem>>, %arg7: memref<1x256xf32, #tpu.memory_space<vmem>>, %arg8: memref<256x128xf32, #tpu.memory_space<vmem>>, %arg9: memref<256x128xf32, #tpu.memory_space<vmem>>) attributes {dimension_semantics = [#tpu.dimension_semantics<parallel>], iteration_bounds = array<i64: 2>, scalar_prefetch = 0 : i64, scratch_operands = 0 : i64, tpu.core_type = #tpu.core_type<tc>, window_params = [{transform_indices = @transform_0, window_bounds = array<i64: 256, 128>}, {pipeline_mode = #tpu.pipeline_mode<synchronous>, transform_indices = @transform_1, window_bounds = array<i64: 128, 128>}, {pipeline_mode = #tpu.pipeline_mode<synchronous>, transform_indices = @transform_2, window_bounds = array<i64: 1, 128>}, {pipeline_mode = #tpu.pipeline_mode<synchronous>, transform_indices = @transform_3, window_bounds = array<i64: 128, 128>}, {pipeline_mode = #tpu.pipeline_mode<synchronous>, transform_indices = @transform_4, window_bounds = array<i64: 1, 128>}, {pipeline_mode = #tpu.pipeline_mode<synchronous>, transform_indices = @transform_5, window_bounds = array<i64: 128, 256>}, {pipeline_mode = #tpu.pipeline_mode<synchronous>, transform_indices = @transform_6, window_bounds = array<i64: 1, 256>}, {transform_indices = @transform_7, window_bounds = array<i64: 256, 128>}, {transform_indices = @transform_8, window_bounds = array<i64: 256, 128>}]} {
    %c0 = arith.constant 0 : index
    %c0_0 = arith.constant 0 : index
    %0 = vector.load %arg1[%c0, %c0_0] : memref<256x128xf32, #tpu.memory_space<vmem>>, vector<256x128xf32>
    %c0_1 = arith.constant 0 : index
    %c0_2 = arith.constant 0 : index
    %1 = vector.load %arg2[%c0_1, %c0_2] : memref<128x128xf32, #tpu.memory_space<vmem>>, vector<128x128xf32>
    %c0_3 = arith.constant 0 : index
    %c0_4 = arith.constant 0 : index
    %2 = vector.load %arg3[%c0_3, %c0_4] : memref<1x128xf32, #tpu.memory_space<vmem>>, vector<1x128xf32>
    %cst = arith.constant dense<0.000000e+00> : vector<256x128xf32>
    %3 = tpu.matmul %0, %1, %cst {dimension_numbers = #tpu.dot_dimension_numbers<[1], [0], [0], [1], [0, 0, 1, 1], [], []>} : vector<256x128xf32>, vector<128x128xf32>, vector<256x128xf32> -> vector<256x128xf32>
    %4 = vector.broadcast %2 : vector<1x128xf32> to vector<256x128xf32>
    %5 = arith.addf %3, %4 : vector<256x128xf32>
    %cst_5 = arith.constant 0.000000e+00 : f32
    %6 = vector.broadcast %cst_5 : f32 to vector<256x128xf32>
    %7 = arith.maximumf %5, %6 : vector<256x128xf32>
    %c0_6 = arith.constant 0 : index
    %c0_7 = arith.constant 0 : index
    %8 = vector.load %arg4[%c0_6, %c0_7] : memref<128x128xf32, #tpu.memory_space<vmem>>, vector<128x128xf32>
    %c0_8 = arith.constant 0 : index
    %c0_9 = arith.constant 0 : index
    %9 = vector.load %arg5[%c0_8, %c0_9] : memref<1x128xf32, #tpu.memory_space<vmem>>, vector<1x128xf32>
    %cst_10 = arith.constant dense<0.000000e+00> : vector<256x128xf32>
    %10 = tpu.matmul %7, %8, %cst_10 {dimension_numbers = #tpu.dot_dimension_numbers<[1], [0], [0], [1], [0, 0, 1, 1], [], []>} : vector<256x128xf32>, vector<128x128xf32>, vector<256x128xf32> -> vector<256x128xf32>
    %11 = vector.broadcast %9 : vector<1x128xf32> to vector<256x128xf32>
    %12 = arith.addf %10, %11 : vector<256x128xf32>
    %cst_11 = arith.constant 0.000000e+00 : f32
    %13 = vector.broadcast %cst_11 : f32 to vector<256x128xf32>
    %14 = arith.maximumf %12, %13 : vector<256x128xf32>
    %c0_12 = arith.constant 0 : index
    %c0_13 = arith.constant 0 : index
    %15 = vector.load %arg6[%c0_12, %c0_13] : memref<128x256xf32, #tpu.memory_space<vmem>>, vector<128x256xf32>
    %c0_14 = arith.constant 0 : index
    %c0_15 = arith.constant 0 : index
    %16 = vector.load %arg7[%c0_14, %c0_15] : memref<1x256xf32, #tpu.memory_space<vmem>>, vector<1x256xf32>
    %cst_16 = arith.constant dense<0.000000e+00> : vector<256x256xf32>
    %17 = tpu.matmul %14, %15, %cst_16 {dimension_numbers = #tpu.dot_dimension_numbers<[1], [0], [0], [1], [0, 0, 1, 1], [], []>} : vector<256x128xf32>, vector<128x256xf32>, vector<256x256xf32> -> vector<256x256xf32>
    %18 = vector.broadcast %16 : vector<1x256xf32> to vector<256x256xf32>
    %19 = arith.addf %17, %18 : vector<256x256xf32>
    %20 = vector.extract_strided_slice %19 {offsets = [0, 0], sizes = [256, 128], strides = [1, 1]} : vector<256x256xf32> to vector<256x128xf32>
    %c0_17 = arith.constant 0 : index
    %c0_18 = arith.constant 0 : index
    %21 = vector.load %arg8[%c0_17, %c0_18] : memref<256x128xf32, #tpu.memory_space<vmem>>, vector<256x128xf32>
    tpu.vector_store %arg8[%c0_17, %c0_18], %20 {strides = array<i32>} : memref<256x128xf32, #tpu.memory_space<vmem>>, vector<256x128xf32>,
    %22 = vector.extract_strided_slice %19 {offsets = [0, 128], sizes = [256, 128], strides = [1, 1]} : vector<256x256xf32> to vector<256x128xf32>
    %23 = math.tanh %22 : vector<256x128xf32>
    %cst_19 = arith.constant 1.000000e+00 : f32
    %24 = vector.broadcast %cst_19 : f32 to vector<256x128xf32>
    %25 = arith.addf %23, %24 : vector<256x128xf32>
    %cst_20 = arith.constant 2.200000e+01 : f32
    %26 = vector.broadcast %cst_20 : f32 to vector<256x128xf32>
    %27 = arith.mulf %26, %25 : vector<256x128xf32>
    %cst_21 = arith.constant 5.000000e-01 : f32
    %28 = vector.broadcast %cst_21 : f32 to vector<256x128xf32>
    %29 = arith.mulf %27, %28 : vector<256x128xf32>
    %cst_22 = arith.constant -2.000000e+01 : f32
    %30 = vector.broadcast %cst_22 : f32 to vector<256x128xf32>
    %31 = arith.addf %30, %29 : vector<256x128xf32>
    %c0_23 = arith.constant 0 : index
    %c0_24 = arith.constant 0 : index
    %32 = vector.load %arg9[%c0_23, %c0_24] : memref<256x128xf32, #tpu.memory_space<vmem>>, vector<256x128xf32>
    tpu.vector_store %arg9[%c0_23, %c0_24], %31 {strides = array<i32>} : memref<256x128xf32, #tpu.memory_space<vmem>>, vector<256x128xf32>,
    return
  }
  func.func @transform_0(%arg0: i32) -> (i32, i32) {
    %c0_i32 = arith.constant 0 : i32
    %c0_i32_0 = arith.constant 0 : i32
    return %arg0, %c0_i32 : i32, i32
  }
  func.func @transform_1(%arg0: i32) -> (i32, i32) {
    %c0_i32 = arith.constant 0 : i32
    %c0_i32_0 = arith.constant 0 : i32
    %c0_i32_1 = arith.constant 0 : i32
    return %c0_i32, %c0_i32_0 : i32, i32
  }
  func.func @transform_2(%arg0: i32) -> (i32, i32) {
    %c0_i32 = arith.constant 0 : i32
    %c0_i32_0 = arith.constant 0 : i32
    %c0_i32_1 = arith.constant 0 : i32
    return %c0_i32, %c0_i32_0 : i32, i32
  }
  func.func @transform_3(%arg0: i32) -> (i32, i32) {
    %c0_i32 = arith.constant 0 : i32
    %c0_i32_0 = arith.constant 0 : i32
    %c0_i32_1 = arith.constant 0 : i32
    return %c0_i32, %c0_i32_0 : i32, i32
  }
  func.func @transform_4(%arg0: i32) -> (i32, i32) {
    %c0_i32 = arith.constant 0 : i32
    %c0_i32_0 = arith.constant 0 : i32
    %c0_i32_1 = arith.constant 0 : i32
    return %c0_i32, %c0_i32_0 : i32, i32
  }
  func.func @transform_5(%arg0: i32) -> (i32, i32) {
    %c0_i32 = arith.constant 0 : i32
    %c0_i32_0 = arith.constant 0 : i32
    %c0_i32_1 = arith.constant 0 : i32
    return %c0_i32, %c0_i32_0 : i32, i32
  }
  func.func @transform_6(%arg0: i32) -> (i32, i32) {
    %c0_i32 = arith.constant 0 : i32
    %c0_i32_0 = arith.constant 0 : i32
    %c0_i32_1 = arith.constant 0 : i32
    return %c0_i32, %c0_i32_0 : i32, i32
  }
  func.func @transform_7(%arg0: i32) -> (i32, i32) {
    %c0_i32 = arith.constant 0 : i32
    %c0_i32_0 = arith.constant 0 : i32
    return %arg0, %c0_i32 : i32, i32
  }
  func.func @transform_8(%arg0: i32) -> (i32, i32) {
    %c0_i32 = arith.constant 0 : i32
    %c0_i32_0 = arith.constant 0 : i32
    return %arg0, %c0_i32 : i32, i32
  }
}

</mosaic_0001>

<llo_original>
// kernel: tpu_custom_call.1
$region0: #{tpu_custom_call.1}
  #allocation0 [shape = 'u32[]', space=smem, size = 0x4, offset = 0x4, fixed_abs, tag = 'smem constant byte address 0x4 - core index']
  #allocation1 [shape = 'u32[72,128]{1,0:T(1,128)}', space=vmem, size = 0x9000, scoped, tag = 'internal scratch']
  %s0 = inlined_call_operand.hbm [shape: f32[512,128], index: 0, kind: input, shape index: {}]
  %s1 = inlined_call_operand.hbm [shape: f32[128,128], index: 1, kind: input, shape index: {}]
  %s2 = inlined_call_operand.vmem [shape: f32[1,128], index: 2, kind: input, shape index: {}]
  %s3 = inlined_call_operand.hbm [shape: f32[128,128], index: 3, kind: input, shape index: {}]
  %s4 = inlined_call_operand.hbm [shape: f32[1,128], index: 4, kind: input, shape index: {}]
  %s5 = inlined_call_operand.hbm [shape: f32[128,256], index: 5, kind: input, shape index: {}]
  %s6 = inlined_call_operand.vmem [shape: f32[1,256], index: 6, kind: input, shape index: {}]
  %s7 = inlined_call_operand.hbm [shape: f32[512,128], index: 7, kind: output, shape index: {0}]
  %s8 = inlined_call_operand.hbm [shape: f32[512,128], index: 8, kind: output, shape index: {1}]
  %9 = xla_tuple %s7, %s8
  %s10 = sld [smem:[#allocation0]]
  $region89: #{tpu_custom_call.1} parent=0
    _
  %s12 = ssub.s32 1, %s10
  %s13 = scalar_select 0, %s12, %s10
  $region1: #{tpu_custom_call.1} parent=0
    #allocation2 [shape = 'u8[262144]{0}', space=vmem, size = 0x40000, scoped, tag = 'input window, operand 0']
    #allocation3 [shape = 's32[2]{0}', space=sflag, size = 0x8, scoped, tag = 'scoped memory for tpu_custom_call.1']
    #allocation4 [shape = 's32[2]{0}', space=sflag, size = 0x8, scoped, tag = 'scoped memory for tpu_custom_call.1']
    #allocation5 [shape = 'u8[65536]{0}', space=vmem, size = 0x10000, scoped, tag = 'input window, operand 1, single buffered']
    #allocation6 [shape = 's32[1]{0}', space=sflag, size = 0x4, scoped, tag = 'scoped memory for tpu_custom_call.1']
    #allocation7 [shape = 'u8[65536]{0}', space=vmem, size = 0x10000, scoped, tag = 'input window, operand 3, single buffered']
    #allocation8 [shape = 'u8[512]{0}', space=vmem, size = 0x400, scoped, tag = 'input window, operand 4, single buffered']
    #allocation9 [shape = 's32[1]{0}', space=sflag, size = 0x4, scoped, tag = 'scoped memory for tpu_custom_call.1']
    #allocation10 [shape = 'u8[131072]{0}', space=vmem, size = 0x20000, scoped, tag = 'input window, operand 5, single buffered']
    #allocation11 [shape = 'u8[262144]{0}', space=vmem, size = 0x40000, scoped, tag = 'output window, operand 0']
    #allocation12 [shape = 'u8[262144]{0}', space=vmem, size = 0x40000, scoped, tag = 'output window, operand 1']
    #allocation13 [shape = 's32[2]{0}', space=sflag, size = 0x8, scoped, tag = 'scoped memory for tpu_custom_call.1']
    %14 = vsyncpa [#allocation3], 0
    %s15 = scalar_lea.sflag [#allocation3], 1
    %16 = vsyncpa %s15, 0
    %17 = vsyncpa [#allocation6], 0
    %18 = vsyncpa [#allocation9], 0
    %19 = vsyncpa [#allocation4], 0
    %s20 = scalar_lea.sflag [#allocation4], 1
    %21 = vsyncpa %s20, 0
    %22 = vsyncpa [#allocation13], 0
    %s23 = scalar_lea.sflag [#allocation13], 1
    %24 = vsyncpa %s23, 0
    loop: start=0, step=1, limit=4
    $region2: #{tpu_custom_call.1} parent=1 // loop_pre_header
      _
    $region3: #{tpu_custom_call.1} parent=1 // loop_header
      %s26 = sphi 0, %s30
      %p27 = scmp.ge.s32.totalorder %s26, 4
      %s36 = sphi 0, %s38
      %s39 = sphi 0, %s36
      %s40 = sphi 0, %s39
      %s56 = sphi 0, %s40
      %s60 = sphi 0, %s60
      %s62 = sphi 0, %s60
      %s63 = sphi 0, %s62
      %s77 = sphi 0, %s63
      %s81 = sphi 0, %s81
      %s83 = sphi 0, %s81
      %s84 = sphi 0, %s83
      %s98 = sphi 0, %s84
      %s102 = sphi 0, %s102
      %s104 = sphi 0, %s102
      %s105 = sphi 0, %s104
      %s119 = sphi 0, %s105
      %s123 = sphi 0, %s123
      %s125 = sphi 0, %s123
      %s126 = sphi 0, %s125
      %s140 = sphi 0, %s126
      %s144 = sphi 0, %s144
      %s146 = sphi 0, %s144
      %s147 = sphi 0, %s146
      %s161 = sphi 0, %s147
      %s165 = sphi 0, %s165
      %s167 = sphi 0, %s165
      %s168 = sphi 0, %s167
      %s182 = sphi 0, %s168
      %s188 = sphi 0, %s190
      %s191 = sphi 0, %s188
      %s192 = sphi 0, %s191
      %s208 = sphi 0, %s192
      %s214 = sphi 0, %s216
      %s217 = sphi 0, %s214
      %s218 = sphi 0, %s217
      %s234 = sphi 0, %s218
    $region4: #{tpu_custom_call.1} parent=1 // loop_header_branch
      %29 = sbr.rel (%p27) target = $region8
    $region5: #{tpu_custom_call.1} parent=1 // loop_body
      %s31 = ssub.s32 %s26, 1
      %s32 = ssub.s32 %s26, 2
      %s33 = sadd.s32 %s26, 1
      %s34 = ssub.s32 %s26, %s33
      %p35 = scmp.eq.s32.totalorder %s34, 0
      %s37 = sadd.s32 %s36, 1
      %s38 = scalar_select %p35, %s36, %s37
      %p41 = pneg %p35
      %p42 = scmp.eq.s32.totalorder %s26, 1
      %p43 = por %p41, %p42
      %p44 = scmp.ne.s32.totalorder %s36, %s39
      %p45 = scmp.eq.s32.totalorder %s26, 0
      %p46 = por %p44, %p45
      %p47 = scmp.ne.s32.totalorder %s36, %s39
      %p48 = scmp.eq.s32.totalorder %s31, 1
      %p49 = por %p47, %p48
      %p50 = scmp.ne.s32.totalorder %s39, %s40
      %p51 = scmp.eq.s32.totalorder %s31, 0
      %p52 = por %p50, %p51
      %p53 = scmp.ne.s32.totalorder %s39, %s40
      %p54 = scmp.eq.s32.totalorder %s32, 1
      %p55 = por %p53, %p54
      %p57 = scmp.ne.s32.totalorder %s40, %s56
      %p58 = scmp.eq.s32.totalorder %s32, 0
      %p59 = por %p57, %p58
      %s61 = sadd.s32 %s60, 1
      %p64 = scmp.eq.s32.totalorder %s26, 1
      %p65 = scmp.ne.s32.totalorder %s60, %s62
      %p66 = scmp.eq.s32.totalorder %s26, 0
      %p67 = por %p65, %p66
      %p68 = scmp.ne.s32.totalorder %s60, %s62
      %p69 = scmp.eq.s32.totalorder %s31, 1
      %p70 = por %p68, %p69
      %p71 = scmp.ne.s32.totalorder %s62, %s63
      %p72 = scmp.eq.s32.totalorder %s31, 0
      %p73 = por %p71, %p72
      %p74 = scmp.ne.s32.totalorder %s62, %s63
      %p75 = scmp.eq.s32.totalorder %s32, 1
      %p76 = por %p74, %p75
      %p78 = scmp.ne.s32.totalorder %s63, %s77
      %p79 = scmp.eq.s32.totalorder %s32, 0
      %p80 = por %p78, %p79
      %s82 = sadd.s32 %s81, 1
      %p85 = scmp.eq.s32.totalorder %s26, 1
      %p86 = scmp.ne.s32.totalorder %s81, %s83
      %p87 = scmp.eq.s32.totalorder %s26, 0
      %p88 = por %p86, %p87
      %p89 = scmp.ne.s32.totalorder %s81, %s83
      %p90 = scmp.eq.s32.totalorder %s31, 1
      %p91 = por %p89, %p90
      %p92 = scmp.ne.s32.totalorder %s83, %s84
      %p93 = scmp.eq.s32.totalorder %s31, 0
      %p94 = por %p92, %p93
      %p95 = scmp.ne.s32.totalorder %s83, %s84
      %p96 = scmp.eq.s32.totalorder %s32, 1
      %p97 = por %p95, %p96
      %p99 = scmp.ne.s32.totalorder %s84, %s98
      %p100 = scmp.eq.s32.totalorder %s32, 0
      %p101 = por %p99, %p100
      %s103 = sadd.s32 %s102, 1
      %p106 = scmp.eq.s32.totalorder %s26, 1
      %p107 = scmp.ne.s32.totalorder %s102, %s104
      %p108 = scmp.eq.s32.totalorder %s26, 0
      %p109 = por %p107, %p108
      %p110 = scmp.ne.s32.totalorder %s102, %s104
      %p111 = scmp.eq.s32.totalorder %s31, 1
      %p112 = por %p110, %p111
      %p113 = scmp.ne.s32.totalorder %s104, %s105
      %p114 = scmp.eq.s32.totalorder %s31, 0
      %p115 = por %p113, %p114
      %p116 = scmp.ne.s32.totalorder %s104, %s105
      %p117 = scmp.eq.s32.totalorder %s32, 1
      %p118 = por %p116, %p117
      %p120 = scmp.ne.s32.totalorder %s105, %s119
      %p121 = scmp.eq.s32.totalorder %s32, 0
      %p122 = por %p120, %p121
      %s124 = sadd.s32 %s123, 1
      %p127 = scmp.eq.s32.totalorder %s26, 1
      %p128 = scmp.ne.s32.totalorder %s123, %s125
      %p129 = scmp.eq.s32.totalorder %s26, 0
      %p130 = por %p128, %p129
      %p131 = scmp.ne.s32.totalorder %s123, %s125
      %p132 = scmp.eq.s32.totalorder %s31, 1
      %p133 = por %p131, %p132
      %p134 = scmp.ne.s32.totalorder %s125, %s126
      %p135 = scmp.eq.s32.totalorder %s31, 0
      %p136 = por %p134, %p135
      %p137 = scmp.ne.s32.totalorder %s125, %s126
      %p138 = scmp.eq.s32.totalorder %s32, 1
      %p139 = por %p137, %p138
      %p141 = scmp.ne.s32.totalorder %s126, %s140
      %p142 = scmp.eq.s32.totalorder %s32, 0
      %p143 = por %p141, %p142
      %s145 = sadd.s32 %s144, 1
      %p148 = scmp.eq.s32.totalorder %s26, 1
      %p149 = scmp.ne.s32.totalorder %s144, %s146
      %p150 = scmp.eq.s32.totalorder %s26, 0
      %p151 = por %p149, %p150
      %p152 = scmp.ne.s32.totalorder %s144, %s146
      %p153 = scmp.eq.s32.totalorder %s31, 1
      %p154 = por %p152, %p153
      %p155 = scmp.ne.s32.totalorder %s146, %s147
      %p156 = scmp.eq.s32.totalorder %s31, 0
      %p157 = por %p155, %p156
      %p158 = scmp.ne.s32.totalorder %s146, %s147
      %p159 = scmp.eq.s32.totalorder %s32, 1
      %p160 = por %p158, %p159
      %p162 = scmp.ne.s32.totalorder %s147, %s161
      %p163 = scmp.eq.s32.totalorder %s32, 0
      %p164 = por %p162, %p163
      %s166 = sadd.s32 %s165, 1
      %p169 = scmp.eq.s32.totalorder %s26, 1
      %p170 = scmp.ne.s32.totalorder %s165, %s167
      %p171 = scmp.eq.s32.totalorder %s26, 0
      %p172 = por %p170, %p171
      %p173 = scmp.ne.s32.totalorder %s165, %s167
      %p174 = scmp.eq.s32.totalorder %s31, 1
      %p175 = por %p173, %p174
      %p176 = scmp.ne.s32.totalorder %s167, %s168
      %p177 = scmp.eq.s32.totalorder %s31, 0
      %p178 = por %p176, %p177
      %p179 = scmp.ne.s32.totalorder %s167, %s168
      %p180 = scmp.eq.s32.totalorder %s32, 1
      %p181 = por %p179, %p180
      %p183 = scmp.ne.s32.totalorder %s168, %s182
      %p184 = scmp.eq.s32.totalorder %s32, 0
      %p185 = por %p183, %p184
      %s186 = ssub.s32 %s26, %s33
      %p187 = scmp.eq.s32.totalorder %s186, 0
      %s189 = sadd.s32 %s188, 1
      %s190 = scalar_select %p187, %s188, %s189
      %p193 = pneg %p187
      %p194 = scmp.eq.s32.totalorder %s26, 1
      %p195 = por %p193, %p194
      %p196 = scmp.ne.s32.totalorder %s188, %s191
      %p197 = scmp.eq.s32.totalorder %s26, 0
      %p198 = por %p196, %p197
      %p199 = scmp.ne.s32.totalorder %s188, %s191
      %p200 = scmp.eq.s32.totalorder %s31, 1
      %p201 = por %p199, %p200
      %p202 = scmp.ne.s32.totalorder %s191, %s192
      %p203 = scmp.eq.s32.totalorder %s31, 0
      %p204 = por %p202, %p203
      %p205 = scmp.ne.s32.totalorder %s191, %s192
      %p206 = scmp.eq.s32.totalorder %s32, 1
      %p207 = por %p205, %p206
      %p209 = scmp.ne.s32.totalorder %s192, %s208
      %p210 = scmp.eq.s32.totalorder %s32, 0
      %p211 = por %p209, %p210
      %s212 = ssub.s32 %s26, %s33
      %p213 = scmp.eq.s32.totalorder %s212, 0
      %s215 = sadd.s32 %s214, 1
      %s216 = scalar_select %p213, %s214, %s215
      %p219 = pneg %p213
      %p220 = scmp.eq.s32.totalorder %s26, 1
      %p221 = por %p219, %p220
      %p222 = scmp.ne.s32.totalorder %s214, %s217
      %p223 = scmp.eq.s32.totalorder %s26, 0
      %p224 = por %p222, %p223
      %p225 = scmp.ne.s32.totalorder %s214, %s217
      %p226 = scmp.eq.s32.totalorder %s31, 1
      %p227 = por %p225, %p226
      %p228 = scmp.ne.s32.totalorder %s217, %s218
      %p229 = scmp.eq.s32.totalorder %s31, 0
      %p230 = por %p228, %p229
      %p231 = scmp.ne.s32.totalorder %s217, %s218
      %p232 = scmp.eq.s32.totalorder %s32, 1
      %p233 = por %p231, %p232
      %p235 = scmp.ne.s32.totalorder %s218, %s234
      %p236 = scmp.eq.s32.totalorder %s32, 0
      %p237 = por %p235, %p236
      %p238 = scmp.le.s32.totalorder 1, %s26
      %p239 = scmp.lt.s32.totalorder %s26, 3
      %p240 = pnand %p238, %p239
      %p241 = pneg %p240
      // Predicated region
      $region9: #{tpu_custom_call.1} parent=5 // pred_check
        _
      $region10: #{tpu_custom_call.1} parent=5 // pred_check_branch
        %243 = sbr.rel (%p240) target = $region12
      $region11: #{tpu_custom_call.1} parent=5 // pred_region
        %s244 = ssub.s32 %s26, 1
        // Predicated region
        $region13: #{tpu_custom_call.1} parent=11 // pred_check
          %p245 = pneg %p73
        $region14: #{tpu_custom_call.1} parent=11 // pred_check_branch
          %247 = sbr.rel (%p245) target = $region16
        $region15: #{tpu_custom_call.1} parent=11 // pred_region
          %249 = vsyncadd [#allocation6], 0
          %s250 = sshll.u32 %s1, 4
          %s251 = int_to_ptr.hbm [resolvable:$true] %s250
          %s252 = sshll.u32 [#allocation5], 4
          %s253 = int_to_ptr.vmem [resolvable:$true] %s252
          %258 = dma.hbm_to_vmem [thread:$0]  %s251, 2048, %s253, [#allocation6], 128, 128, 8
        $region16: #{tpu_custom_call.1} parent=11 // pred_fallthru
          _
        // Predicated region
        $region17: #{tpu_custom_call.1} parent=11 // pred_check
          %p259 = pneg %p94
        $region18: #{tpu_custom_call.1} parent=11 // pred_check_branch
          %261 = sbr.rel (%p259) target = $region20
        $region19: #{tpu_custom_call.1} parent=11 // pred_region
          _
        $region20: #{tpu_custom_call.1} parent=11 // pred_fallthru
          _
        // Predicated region
        $region21: #{tpu_custom_call.1} parent=11 // pred_check
          %p262 = pneg %p115
        $region22: #{tpu_custom_call.1} parent=11 // pred_check_branch
          %264 = sbr.rel (%p262) target = $region24
        $region23: #{tpu_custom_call.1} parent=11 // pred_region
          %266 = vsyncadd [#allocation6], 0
          %s267 = sshll.u32 %s3, 4
          %s268 = int_to_ptr.hbm [resolvable:$true] %s267
          %s269 = sshll.u32 [#allocation7], 4
          %s270 = int_to_ptr.vmem [resolvable:$true] %s269
          %275 = dma.hbm_to_vmem [thread:$0]  %s268, 2048, %s270, [#allocation6], 128, 128, 8
        $region24: #{tpu_custom_call.1} parent=11 // pred_fallthru
          _
        // Predicated region
        $region25: #{tpu_custom_call.1} parent=11 // pred_check
          %p276 = pneg %p136
        $region26: #{tpu_custom_call.1} parent=11 // pred_check_branch
          %278 = sbr.rel (%p276) target = $region28
        $region27: #{tpu_custom_call.1} parent=11 // pred_region
          %280 = vsyncadd [#allocation9], 0
          %s282 = sshll.u32 %s4, 4
          %s283 = int_to_ptr.hbm [resolvable:$true] %s282
          %s284 = sshll.u32 [#allocation8], 4
          %s285 = int_to_ptr.vmem [resolvable:$true] %s284
          %287 = dma.hbm_to_vmem [thread:$0]  %s283, 16, %s285, [#allocation9]
        $region28: #{tpu_custom_call.1} parent=11 // pred_fallthru
          _
        // Predicated region
        $region29: #{tpu_custom_call.1} parent=11 // pred_check
          %p288 = pneg %p157
        $region30: #{tpu_custom_call.1} parent=11 // pred_check_branch
          %290 = sbr.rel (%p288) target = $region32
        $region31: #{tpu_custom_call.1} parent=11 // pred_region
          %292 = vsyncadd [#allocation9], 0
          %s293 = sshll.u32 %s5, 4
          %s294 = int_to_ptr.hbm [resolvable:$true] %s293
          %s295 = sshll.u32 [#allocation10], 4
          %s296 = int_to_ptr.vmem [resolvable:$true] %s295
          %301 = dma.hbm_to_vmem [thread:$0]  %s294, 4096, %s296, [#allocation9], 256, 256, 16
        $region32: #{tpu_custom_call.1} parent=11 // pred_fallthru
          _
        // Predicated region
        $region33: #{tpu_custom_call.1} parent=11 // pred_check
          %p302 = pneg %p178
        $region34: #{tpu_custom_call.1} parent=11 // pred_check_branch
          %304 = sbr.rel (%p302) target = $region36
        $region35: #{tpu_custom_call.1} parent=11 // pred_region
          _
        $region36: #{tpu_custom_call.1} parent=11 // pred_fallthru
          _
      $region12: #{tpu_custom_call.1} parent=5 // pred_fallthru
        _
      %p305 = scmp.lt.s32.totalorder %s26, 2
      // Predicated region
      $region37: #{tpu_custom_call.1} parent=5 // pred_check
        %p306 = pneg %p305
      $region38: #{tpu_custom_call.1} parent=5 // pred_check_branch
        %308 = sbr.rel (%p306) target = $region40
      $region39: #{tpu_custom_call.1} parent=5 // pred_region
        // Predicated region
        $region41: #{tpu_custom_call.1} parent=39 // pred_check
          %p309 = pneg %p46
        $region42: #{tpu_custom_call.1} parent=39 // pred_check_branch
          %311 = sbr.rel (%p309) target = $region44
        $region43: #{tpu_custom_call.1} parent=39 // pred_region
          %s312 = sand.u32 %s36, 1
          %s313 = scalar_lea.sflag [#allocation3], %s312
          %s314 = sand.u32 %s36, 1
          %s315 = smul.addr %s314, 256
          %s316 = scalar_lea.vmem [#allocation2], %s315
          %s317 = smul.u32 32, %s26
          %319 = vsyncadd %s313, 0
          %s320 = smul.addr %s317, 8
          %s321 = scalar_lea.hbm %s0, %s320
          %s322 = sshll.u32 %s321, 4
          %s323 = int_to_ptr.hbm [resolvable:$true] %s322
          %s324 = sshll.u32 %s316, 4
          %s325 = int_to_ptr.vmem [resolvable:$true] %s324
          %330 = dma.hbm_to_vmem [thread:$0]  %s323, 4096, %s325, %s313, 128, 128, 8
        $region44: #{tpu_custom_call.1} parent=39 // pred_fallthru
          _
      $region40: #{tpu_custom_call.1} parent=5 // pred_fallthru
        _
      %p331 = scmp.le.s32.totalorder 1, %s26
      %p332 = scmp.lt.s32.totalorder %s26, 3
      %p333 = pnand %p331, %p332
      %p334 = pneg %p333
      // Predicated region
      $region45: #{tpu_custom_call.1} parent=5 // pred_check
        _
      $region46: #{tpu_custom_call.1} parent=5 // pred_check_branch
        %336 = sbr.rel (%p333) target = $region48
      $region47: #{tpu_custom_call.1} parent=5 // pred_region
        %s337 = ssub.s32 %s26, 1
        %s338 = sand.u32 %s39, 1
        %s339 = scalar_lea.sflag [#allocation3], %s338
        %s340 = sand.u32 %s39, 1
        %s341 = smul.addr %s340, 256
        %s342 = scalar_lea.vmem [#allocation2], %s341
        // Predicated region
        $region49: #{tpu_custom_call.1} parent=47 // pred_check
          %p343 = pneg %p52
        $region50: #{tpu_custom_call.1} parent=47 // pred_check_branch
          %345 = sbr.rel (%p343) target = $region52
        $region51: #{tpu_custom_call.1} parent=47 // pred_region
          %347 = dma.done %s339, 4096
        $region52: #{tpu_custom_call.1} parent=47 // pred_fallthru
          _
        // Predicated region
        $region53: #{tpu_custom_call.1} parent=47 // pred_check
          %p348 = pneg %p73
        $region54: #{tpu_custom_call.1} parent=47 // pred_check_branch
          %350 = sbr.rel (%p348) target = $region56
        $region55: #{tpu_custom_call.1} parent=47 // pred_region
          %352 = dma.done [#allocation6], 2048
        $region56: #{tpu_custom_call.1} parent=47 // pred_fallthru
          _
        // Predicated region
        $region57: #{tpu_custom_call.1} parent=47 // pred_check
          %p353 = pneg %p115
        $region58: #{tpu_custom_call.1} parent=47 // pred_check_branch
          %355 = sbr.rel (%p353) target = $region60
        $region59: #{tpu_custom_call.1} parent=47 // pred_region
          %357 = dma.done [#allocation6], 2048
        $region60: #{tpu_custom_call.1} parent=47 // pred_fallthru
          _
        // Predicated region
        $region61: #{tpu_custom_call.1} parent=47 // pred_check
          %p358 = pneg %p136
        $region62: #{tpu_custom_call.1} parent=47 // pred_check_branch
          %360 = sbr.rel (%p358) target = $region64
        $region63: #{tpu_custom_call.1} parent=47 // pred_region
          %362 = dma.done [#allocation9], 16
        $region64: #{tpu_custom_call.1} parent=47 // pred_fallthru
          _
        // Predicated region
        $region65: #{tpu_custom_call.1} parent=47 // pred_check
          %p363 = pneg %p157
        $region66: #{tpu_custom_call.1} parent=47 // pred_check_branch
          %365 = sbr.rel (%p363) target = $region68
        $region67: #{tpu_custom_call.1} parent=47 // pred_region
          %367 = dma.done [#allocation9], 4096
        $region68: #{tpu_custom_call.1} parent=47 // pred_fallthru
          _
        %s368 = sand.u32 %s39, 1
        %s369 = scalar_lea.sflag [#allocation3], %s368
        %s370 = sand.u32 %s39, 1
        %s371 = smul.addr %s370, 256
        %s372 = scalar_lea.vmem [#allocation2], %s371
        %p373 = pneg %p52
        %p374 = pneg %p49
        %p375 = pneg %p73
        %p376 = pneg %p70
        %p377 = pneg %p94
        %p378 = pneg %p91
        %p379 = pneg %p115
        %p380 = pneg %p112
        %p381 = pneg %p136
        %p382 = pneg %p133
        %p383 = pneg %p157
        %p384 = pneg %p154
        %p385 = pneg %p178
        %p386 = pneg %p175
        %p387 = pneg %p204
        %p388 = pneg %p201
        %s389 = sand.u32 %s191, 1
        %s390 = scalar_lea.sflag [#allocation4], %s389
        %s391 = sand.u32 %s191, 1
        %s392 = smul.addr %s391, 256
        %s393 = scalar_lea.vmem [#allocation11], %s392
        %p394 = pneg %p230
        %p395 = pneg %p227
        %s396 = sand.u32 %s217, 1
        %s397 = scalar_lea.sflag [#allocation13], %s396
        %s398 = sand.u32 %s217, 1
        %s399 = smul.addr %s398, 256
        %s400 = scalar_lea.vmem [#allocation12], %s399
        %s401 = smul.u32 32, %s31
        %s402 = smul.u32 32, %s31
        %s403 = smul.u32 32, %s31
        %v404 = vld [vmem:[%s342] sm:$0xff]
        %v405 = vld [vmem:[%s342 + $0x8] sm:$0xff]
        %v406 = vld [vmem:[%s342 + $0x10] sm:$0xff]
        %v407 = vld [vmem:[%s342 + $0x18] sm:$0xff]
        %v408 = vld [vmem:[%s342 + $0x20] sm:$0xff]
        %v409 = vld [vmem:[%s342 + $0x28] sm:$0xff]
        %v410 = vld [vmem:[%s342 + $0x30] sm:$0xff]
        %v411 = vld [vmem:[%s342 + $0x38] sm:$0xff]
        %v412 = vld [vmem:[%s342 + $0x40] sm:$0xff]
        %v413 = vld [vmem:[%s342 + $0x48] sm:$0xff]
        %v414 = vld [vmem:[%s342 + $0x50] sm:$0xff]
        %v415 = vld [vmem:[%s342 + $0x58] sm:$0xff]
        %v416 = vld [vmem:[%s342 + $0x60] sm:$0xff]
        %v417 = vld [vmem:[%s342 + $0x68] sm:$0xff]
        %v418 = vld [vmem:[%s342 + $0x70] sm:$0xff]
        %v419 = vld [vmem:[%s342 + $0x78] sm:$0xff]
        %v420 = vld [vmem:[%s342 + $0x80] sm:$0xff]
        %v421 = vld [vmem:[%s342 + $0x88] sm:$0xff]
        %v422 = vld [vmem:[%s342 + $0x90] sm:$0xff]
        %v423 = vld [vmem:[%s342 + $0x98] sm:$0xff]
        %v424 = vld [vmem:[%s342 + $0xa0] sm:$0xff]
        %v425 = vld [vmem:[%s342 + $0xa8] sm:$0xff]
        %v426 = vld [vmem:[%s342 + $0xb0] sm:$0xff]
        %v427 = vld [vmem:[%s342 + $0xb8] sm:$0xff]
        %v428 = vld [vmem:[%s342 + $0xc0] sm:$0xff]
        %v429 = vld [vmem:[%s342 + $0xc8] sm:$0xff]
        %v430 = vld [vmem:[%s342 + $0xd0] sm:$0xff]
        %v431 = vld [vmem:[%s342 + $0xd8] sm:$0xff]
        %v432 = vld [vmem:[%s342 + $0xe0] sm:$0xff]
        %v433 = vld [vmem:[%s342 + $0xe8] sm:$0xff]
        %v434 = vld [vmem:[%s342 + $0xf0] sm:$0xff]
        %v435 = vld [vmem:[%s342 + $0xf8] sm:$0xff]
        %v436 = vld [vmem:[#allocation5] sm:$0xff]
        %v437 = vld [vmem:[#allocation5 + $0x8] sm:$0xff]
        %v438 = vld [vmem:[#allocation5 + $0x10] sm:$0xff]
        %v439 = vld [vmem:[#allocation5 + $0x18] sm:$0xff]
        %v440 = vld [vmem:[#allocation5 + $0x20] sm:$0xff]
        %v441 = vld [vmem:[#allocation5 + $0x28] sm:$0xff]
        %v442 = vld [vmem:[#allocation5 + $0x30] sm:$0xff]
        %v443 = vld [vmem:[#allocation5 + $0x38] sm:$0xff]
        %v444 = vld [vmem:[#allocation5 + $0x40] sm:$0xff]
        %v445 = vld [vmem:[#allocation5 + $0x48] sm:$0xff]
        %v446 = vld [vmem:[#allocation5 + $0x50] sm:$0xff]
        %v447 = vld [vmem:[#allocation5 + $0x58] sm:$0xff]
        %v448 = vld [vmem:[#allocation5 + $0x60] sm:$0xff]
        %v449 = vld [vmem:[#allocation5 + $0x68] sm:$0xff]
        %v450 = vld [vmem:[#allocation5 + $0x70] sm:$0xff]
        %v451 = vld [vmem:[#allocation5 + $0x78] sm:$0xff]
        %v452 = vld [vmem:[%s2] sm:$0x1]
        %v454 = vperm.slane %v452, 0
        %456 = vmatpush.msra.mxu0 %v451
        %457 = vmatpush.msra.mxu0 %v450
        %458 = vmatpush.msra.mxu0 %v449
        %459 = vmatpush.msra.mxu0 %v448
        %460 = vmatpush.msra.mxu0 %v447
        %461 = vmatpush.msra.mxu0 %v446
        %462 = vmatpush.msra.mxu0 %v445
        %463 = vmatpush.msra.mxu0 %v444
        %464 = vmatpush.msra.mxu0 %v443
        %465 = vmatpush.msra.mxu0 %v442
        %466 = vmatpush.msra.mxu0 %v441
        %467 = vmatpush.msra.mxu0 %v440
        %468 = vmatpush.msra.mxu0 %v439
        %469 = vmatpush.msra.mxu0 %v438
        %470 = vmatpush.msra.mxu0 %v437
        %471 = vmatpush.msra.mxu0 %v436
        %472 = vmatmul.f32.gmra.mxu0 %v404
        %v473 = vpop.f32.mrf.mxu0
        %v474 = vadd.f32 %v454, %v473
        %475 = vmatmul.f32.gmra.mxu0 %v405
        %v476 = vpop.f32.mrf.mxu0
        %v477 = vadd.f32 %v454, %v476
        %478 = vmatmul.f32.gmra.mxu0 %v406
        %v479 = vpop.f32.mrf.mxu0
        %v480 = vadd.f32 %v454, %v479
        %481 = vmatmul.f32.gmra.mxu0 %v407
        %v482 = vpop.f32.mrf.mxu0
        %v483 = vadd.f32 %v454, %v482
        %484 = vmatmul.f32.gmra.mxu0 %v408
        %v485 = vpop.f32.mrf.mxu0
        %v486 = vadd.f32 %v454, %v485
        %487 = vmatmul.f32.gmra.mxu0 %v409
        %v488 = vpop.f32.mrf.mxu0
        %v489 = vadd.f32 %v454, %v488
        %490 = vmatmul.f32.gmra.mxu0 %v410
        %v491 = vpop.f32.mrf.mxu0
        %v492 = vadd.f32 %v454, %v491
        %493 = vmatmul.f32.gmra.mxu0 %v411
        %v494 = vpop.f32.mrf.mxu0
        %v495 = vadd.f32 %v454, %v494
        %496 = vmatmul.f32.gmra.mxu0 %v412
        %v497 = vpop.f32.mrf.mxu0
        %v498 = vadd.f32 %v454, %v497
        %499 = vmatmul.f32.gmra.mxu0 %v413
        %v500 = vpop.f32.mrf.mxu0
        %v501 = vadd.f32 %v454, %v500
        %502 = vmatmul.f32.gmra.mxu0 %v414
        %v503 = vpop.f32.mrf.mxu0
        %v504 = vadd.f32 %v454, %v503
        %505 = vmatmul.f32.gmra.mxu0 %v415
        %v506 = vpop.f32.mrf.mxu0
        %v507 = vadd.f32 %v454, %v506
        %508 = vmatmul.f32.gmra.mxu0 %v416
        %v509 = vpop.f32.mrf.mxu0
        %v510 = vadd.f32 %v454, %v509
        %511 = vmatmul.f32.gmra.mxu0 %v417
        %v512 = vpop.f32.mrf.mxu0
        %v513 = vadd.f32 %v454, %v512
        %514 = vmatmul.f32.gmra.mxu0 %v418
        %v515 = vpop.f32.mrf.mxu0
        %v516 = vadd.f32 %v454, %v515
        %517 = vmatmul.f32.gmra.mxu0 %v419
        %v518 = vpop.f32.mrf.mxu0
        %v519 = vadd.f32 %v454, %v518
        %520 = vmatmul.f32.gmra.mxu0 %v420
        %v521 = vpop.f32.mrf.mxu0
        %v522 = vadd.f32 %v454, %v521
        %523 = vmatmul.f32.gmra.mxu0 %v421
        %v524 = vpop.f32.mrf.mxu0
        %v525 = vadd.f32 %v454, %v524
        %526 = vmatmul.f32.gmra.mxu0 %v422
        %v527 = vpop.f32.mrf.mxu0
        %v528 = vadd.f32 %v454, %v527
        %529 = vmatmul.f32.gmra.mxu0 %v423
        %v530 = vpop.f32.mrf.mxu0
        %v531 = vadd.f32 %v454, %v530
        %532 = vmatmul.f32.gmra.mxu0 %v424
        %v533 = vpop.f32.mrf.mxu0
        %v534 = vadd.f32 %v454, %v533
        %535 = vmatmul.f32.gmra.mxu0 %v425
        %v536 = vpop.f32.mrf.mxu0
        %v537 = vadd.f32 %v454, %v536
        %538 = vmatmul.f32.gmra.mxu0 %v426
        %v539 = vpop.f32.mrf.mxu0
        %v540 = vadd.f32 %v454, %v539
        %541 = vmatmul.f32.gmra.mxu0 %v427
        %v542 = vpop.f32.mrf.mxu0
        %v543 = vadd.f32 %v454, %v542
        %544 = vmatmul.f32.gmra.mxu0 %v428
        %v545 = vpop.f32.mrf.mxu0
        %v546 = vadd.f32 %v454, %v545
        %547 = vmatmul.f32.gmra.mxu0 %v429
        %v548 = vpop.f32.mrf.mxu0
        %v549 = vadd.f32 %v454, %v548
        %550 = vmatmul.f32.gmra.mxu0 %v430
        %v551 = vpop.f32.mrf.mxu0
        %v552 = vadd.f32 %v454, %v551
        %553 = vmatmul.f32.gmra.mxu0 %v431
        %v554 = vpop.f32.mrf.mxu0
        %v555 = vadd.f32 %v454, %v554
        %556 = vmatmul.f32.gmra.mxu0 %v432
        %v557 = vpop.f32.mrf.mxu0
        %v558 = vadd.f32 %v454, %v557
        %559 = vmatmul.f32.gmra.mxu0 %v433
        %v560 = vpop.f32.mrf.mxu0
        %v561 = vadd.f32 %v454, %v560
        %562 = vmatmul.f32.gmra.mxu0 %v434
        %v563 = vpop.f32.mrf.mxu0
        %v564 = vadd.f32 %v454, %v563
        %565 = vmatmul.f32.gmra.mxu0 %v435
        %v566 = vpop.f32.mrf.mxu0
        %v567 = vadd.f32 %v454, %v566
        %568 = vdwg.mxu0
        %v569 = vmax.f32 %v474, 0.0
        %v570 = vmax.f32 %v477, 0.0
        %v571 = vmax.f32 %v480, 0.0
        %v572 = vmax.f32 %v483, 0.0
        %v573 = vmax.f32 %v486, 0.0
        %v574 = vmax.f32 %v489, 0.0
        %v575 = vmax.f32 %v492, 0.0
        %v576 = vmax.f32 %v495, 0.0
        %v577 = vmax.f32 %v498, 0.0
        %v578 = vmax.f32 %v501, 0.0
        %v579 = vmax.f32 %v504, 0.0
        %v580 = vmax.f32 %v507, 0.0
        %v581 = vmax.f32 %v510, 0.0
        %v582 = vmax.f32 %v513, 0.0
        %v583 = vmax.f32 %v516, 0.0
        %v584 = vmax.f32 %v519, 0.0
        %v585 = vmax.f32 %v522, 0.0
        %v586 = vmax.f32 %v525, 0.0
        %v587 = vmax.f32 %v528, 0.0
        %v588 = vmax.f32 %v531, 0.0
        %v589 = vmax.f32 %v534, 0.0
        %v590 = vmax.f32 %v537, 0.0
        %v591 = vmax.f32 %v540, 0.0
        %v592 = vmax.f32 %v543, 0.0
        %v593 = vmax.f32 %v546, 0.0
        %v594 = vmax.f32 %v549, 0.0
        %v595 = vmax.f32 %v552, 0.0
        %v596 = vmax.f32 %v555, 0.0
        %v597 = vmax.f32 %v558, 0.0
        %v598 = vmax.f32 %v561, 0.0
        %v599 = vmax.f32 %v564, 0.0
        %v600 = vmax.f32 %v567, 0.0
        %v601 = vld [vmem:[#allocation7] sm:$0xff]
        %v602 = vld [vmem:[#allocation7 + $0x8] sm:$0xff]
        %v603 = vld [vmem:[#allocation7 + $0x10] sm:$0xff]
        %v604 = vld [vmem:[#allocation7 + $0x18] sm:$0xff]
        %v605 = vld [vmem:[#allocation7 + $0x20] sm:$0xff]
        %v606 = vld [vmem:[#allocation7 + $0x28] sm:$0xff]
        %v607 = vld [vmem:[#allocation7 + $0x30] sm:$0xff]
        %v608 = vld [vmem:[#allocation7 + $0x38] sm:$0xff]
        %v609 = vld [vmem:[#allocation7 + $0x40] sm:$0xff]
        %v610 = vld [vmem:[#allocation7 + $0x48] sm:$0xff]
        %v611 = vld [vmem:[#allocation7 + $0x50] sm:$0xff]
        %v612 = vld [vmem:[#allocation7 + $0x58] sm:$0xff]
        %v613 = vld [vmem:[#allocation7 + $0x60] sm:$0xff]
        %v614 = vld [vmem:[#allocation7 + $0x68] sm:$0xff]
        %v615 = vld [vmem:[#allocation7 + $0x70] sm:$0xff]
        %v616 = vld [vmem:[#allocation7 + $0x78] sm:$0xff]
        %v617 = vld [vmem:[#allocation8] sm:$0x1]
        %v619 = vperm.slane %v617, 0
        %621 = vmatpush.msra.mxu0 %v616
        %622 = vmatpush.msra.mxu0 %v615
        %623 = vmatpush.msra.mxu0 %v614
        %624 = vmatpush.msra.mxu0 %v613
        %625 = vmatpush.msra.mxu0 %v612
        %626 = vmatpush.msra.mxu0 %v611
        %627 = vmatpush.msra.mxu0 %v610
        %628 = vmatpush.msra.mxu0 %v609
        %629 = vmatpush.msra.mxu0 %v608
        %630 = vmatpush.msra.mxu0 %v607
        %631 = vmatpush.msra.mxu0 %v606
        %632 = vmatpush.msra.mxu0 %v605
        %633 = vmatpush.msra.mxu0 %v604
        %634 = vmatpush.msra.mxu0 %v603
        %635 = vmatpush.msra.mxu0 %v602
        %636 = vmatpush.msra.mxu0 %v601
        %637 = vmatmul.f32.gmra.mxu0 %v569
        %v638 = vpop.f32.mrf.mxu0
        %v639 = vadd.f32 %v619, %v638
        %640 = vmatmul.f32.gmra.mxu0 %v570
        %v641 = vpop.f32.mrf.mxu0
        %v642 = vadd.f32 %v619, %v641
        %643 = vmatmul.f32.gmra.mxu0 %v571
        %v644 = vpop.f32.mrf.mxu0
        %v645 = vadd.f32 %v619, %v644
        %646 = vmatmul.f32.gmra.mxu0 %v572
        %v647 = vpop.f32.mrf.mxu0
        %v648 = vadd.f32 %v619, %v647
        %649 = vmatmul.f32.gmra.mxu0 %v573
        %v650 = vpop.f32.mrf.mxu0
        %v651 = vadd.f32 %v619, %v650
        %652 = vmatmul.f32.gmra.mxu0 %v574
        %v653 = vpop.f32.mrf.mxu0
        %v654 = vadd.f32 %v619, %v653
        %655 = vmatmul.f32.gmra.mxu0 %v575
        %v656 = vpop.f32.mrf.mxu0
        %v657 = vadd.f32 %v619, %v656
        %658 = vmatmul.f32.gmra.mxu0 %v576
        %v659 = vpop.f32.mrf.mxu0
        %v660 = vadd.f32 %v619, %v659
        %661 = vmatmul.f32.gmra.mxu0 %v577
        %v662 = vpop.f32.mrf.mxu0
        %v663 = vadd.f32 %v619, %v662
        %664 = vmatmul.f32.gmra.mxu0 %v578
        %v665 = vpop.f32.mrf.mxu0
        %v666 = vadd.f32 %v619, %v665
        %667 = vmatmul.f32.gmra.mxu0 %v579
        %v668 = vpop.f32.mrf.mxu0
        %v669 = vadd.f32 %v619, %v668
        %670 = vmatmul.f32.gmra.mxu0 %v580
        %v671 = vpop.f32.mrf.mxu0
        %v672 = vadd.f32 %v619, %v671
        %673 = vmatmul.f32.gmra.mxu0 %v581
        %v674 = vpop.f32.mrf.mxu0
        %v675 = vadd.f32 %v619, %v674
        %676 = vmatmul.f32.gmra.mxu0 %v582
        %v677 = vpop.f32.mrf.mxu0
        %v678 = vadd.f32 %v619, %v677
        %679 = vmatmul.f32.gmra.mxu0 %v583
        %v680 = vpop.f32.mrf.mxu0
        %v681 = vadd.f32 %v619, %v680
        %682 = vmatmul.f32.gmra.mxu0 %v584
        %v683 = vpop.f32.mrf.mxu0
        %v684 = vadd.f32 %v619, %v683
        %685 = vmatmul.f32.gmra.mxu0 %v585
        %v686 = vpop.f32.mrf.mxu0
        %v687 = vadd.f32 %v619, %v686
        %688 = vmatmul.f32.gmra.mxu0 %v586
        %v689 = vpop.f32.mrf.mxu0
        %v690 = vadd.f32 %v619, %v689
        %691 = vmatmul.f32.gmra.mxu0 %v587
        %v692 = vpop.f32.mrf.mxu0
        %v693 = vadd.f32 %v619, %v692
        %694 = vmatmul.f32.gmra.mxu0 %v588
        %v695 = vpop.f32.mrf.mxu0
        %v696 = vadd.f32 %v619, %v695
        %697 = vmatmul.f32.gmra.mxu0 %v589
        %v698 = vpop.f32.mrf.mxu0
        %v699 = vadd.f32 %v619, %v698
        %700 = vmatmul.f32.gmra.mxu0 %v590
        %v701 = vpop.f32.mrf.mxu0
        %v702 = vadd.f32 %v619, %v701
        %703 = vmatmul.f32.gmra.mxu0 %v591
        %v704 = vpop.f32.mrf.mxu0
        %v705 = vadd.f32 %v619, %v704
        %706 = vmatmul.f32.gmra.mxu0 %v592
        %v707 = vpop.f32.mrf.mxu0
        %v708 = vadd.f32 %v619, %v707
        %709 = vmatmul.f32.gmra.mxu0 %v593
        %v710 = vpop.f32.mrf.mxu0
        %v711 = vadd.f32 %v619, %v710
        %712 = vmatmul.f32.gmra.mxu0 %v594
        %v713 = vpop.f32.mrf.mxu0
        %v714 = vadd.f32 %v619, %v713
        %715 = vmatmul.f32.gmra.mxu0 %v595
        %v716 = vpop.f32.mrf.mxu0
        %v717 = vadd.f32 %v619, %v716
        %718 = vmatmul.f32.gmra.mxu0 %v596
        %v719 = vpop.f32.mrf.mxu0
        %v720 = vadd.f32 %v619, %v719
        %721 = vmatmul.f32.gmra.mxu0 %v597
        %v722 = vpop.f32.mrf.mxu0
        %v723 = vadd.f32 %v619, %v722
        %724 = vmatmul.f32.gmra.mxu0 %v598
        %v725 = vpop.f32.mrf.mxu0
        %v726 = vadd.f32 %v619, %v725
        %727 = vmatmul.f32.gmra.mxu0 %v599
        %v728 = vpop.f32.mrf.mxu0
        %v729 = vadd.f32 %v619, %v728
        %730 = vmatmul.f32.gmra.mxu0 %v600
        %v731 = vpop.f32.mrf.mxu0
        %v732 = vadd.f32 %v619, %v731
        %733 = vdwg.mxu0
        %v734 = vmax.f32 %v639, 0.0
        %v735 = vmax.f32 %v642, 0.0
        %v736 = vmax.f32 %v645, 0.0
        %v737 = vmax.f32 %v648, 0.0
        %v738 = vmax.f32 %v651, 0.0
        %v739 = vmax.f32 %v654, 0.0
        %v740 = vmax.f32 %v657, 0.0
        %v741 = vmax.f32 %v660, 0.0
        %v742 = vmax.f32 %v663, 0.0
        %v743 = vmax.f32 %v666, 0.0
        %v744 = vmax.f32 %v669, 0.0
        %v745 = vmax.f32 %v672, 0.0
        %v746 = vmax.f32 %v675, 0.0
        %v747 = vmax.f32 %v678, 0.0
        %v748 = vmax.f32 %v681, 0.0
        %v749 = vmax.f32 %v684, 0.0
        %v750 = vmax.f32 %v687, 0.0
        %v751 = vmax.f32 %v690, 0.0
        %v752 = vmax.f32 %v693, 0.0
        %v753 = vmax.f32 %v696, 0.0
        %v754 = vmax.f32 %v699, 0.0
        %v755 = vmax.f32 %v702, 0.0
        %v756 = vmax.f32 %v705, 0.0
        %v757 = vmax.f32 %v708, 0.0
        %v758 = vmax.f32 %v711, 0.0
        %v759 = vmax.f32 %v714, 0.0
        %v760 = vmax.f32 %v717, 0.0
        %v761 = vmax.f32 %v720, 0.0
        %v762 = vmax.f32 %v723, 0.0
        %v763 = vmax.f32 %v726, 0.0
        %v764 = vmax.f32 %v729, 0.0
        %v765 = vmax.f32 %v732, 0.0
        %v766 = vld [vmem:[#allocation10] sm:$0xff]
        %v767 = vld [vmem:[#allocation10 + $0x8] sm:$0xff]
        %v768 = vld [vmem:[#allocation10 + $0x10] sm:$0xff]
        %v769 = vld [vmem:[#allocation10 + $0x18] sm:$0xff]
        %v770 = vld [vmem:[#allocation10 + $0x20] sm:$0xff]
        %v771 = vld [vmem:[#allocation10 + $0x28] sm:$0xff]
        %v772 = vld [vmem:[#allocation10 + $0x30] sm:$0xff]
        %v773 = vld [vmem:[#allocation10 + $0x38] sm:$0xff]
        %v774 = vld [vmem:[#allocation10 + $0x40] sm:$0xff]
        %v775 = vld [vmem:[#allocation10 + $0x48] sm:$0xff]
        %v776 = vld [vmem:[#allocation10 + $0x50] sm:$0xff]
        %v777 = vld [vmem:[#allocation10 + $0x58] sm:$0xff]
        %v778 = vld [vmem:[#allocation10 + $0x60] sm:$0xff]
        %v779 = vld [vmem:[#allocation10 + $0x68] sm:$0xff]
        %v780 = vld [vmem:[#allocation10 + $0x70] sm:$0xff]
        %v781 = vld [vmem:[#allocation10 + $0x78] sm:$0xff]
        %v782 = vld [vmem:[#allocation10 + $0x80] sm:$0xff]
        %v783 = vld [vmem:[#allocation10 + $0x88] sm:$0xff]
        %v784 = vld [vmem:[#allocation10 + $0x90] sm:$0xff]
        %v785 = vld [vmem:[#allocation10 + $0x98] sm:$0xff]
        %v786 = vld [vmem:[#allocation10 + $0xa0] sm:$0xff]
        %v787 = vld [vmem:[#allocation10 + $0xa8] sm:$0xff]
        %v788 = vld [vmem:[#allocation10 + $0xb0] sm:$0xff]
        %v789 = vld [vmem:[#allocation10 + $0xb8] sm:$0xff]
        %v790 = vld [vmem:[#allocation10 + $0xc0] sm:$0xff]
        %v791 = vld [vmem:[#allocation10 + $0xc8] sm:$0xff]
        %v792 = vld [vmem:[#allocation10 + $0xd0] sm:$0xff]
        %v793 = vld [vmem:[#allocation10 + $0xd8] sm:$0xff]
        %v794 = vld [vmem:[#allocation10 + $0xe0] sm:$0xff]
        %v795 = vld [vmem:[#allocation10 + $0xe8] sm:$0xff]
        %v796 = vld [vmem:[#allocation10 + $0xf0] sm:$0xff]
        %v797 = vld [vmem:[#allocation10 + $0xf8] sm:$0xff]
        %v798 = vld [vmem:[%s6] sm:$0x3]
        %v800 = vperm.slane %v798, 0
        %v801 = vperm.slane %v798, 1
        %804 = vmatpush.msra.mxu0 %v796
        %805 = vmatpush.msra.mxu0 %v794
        %806 = vmatpush.msra.mxu0 %v792
        %807 = vmatpush.msra.mxu0 %v790
        %808 = vmatpush.msra.mxu0 %v788
        %809 = vmatpush.msra.mxu0 %v786
        %810 = vmatpush.msra.mxu0 %v784
        %811 = vmatpush.msra.mxu0 %v782
        %812 = vmatpush.msra.mxu0 %v780
        %813 = vmatpush.msra.mxu0 %v778
        %814 = vmatpush.msra.mxu0 %v776
        %815 = vmatpush.msra.mxu0 %v774
        %816 = vmatpush.msra.mxu0 %v772
        %817 = vmatpush.msra.mxu0 %v770
        %818 = vmatpush.msra.mxu0 %v768
        %819 = vmatpush.msra.mxu0 %v766
        %820 = vmatmul.f32.gmra.mxu0 %v734
        %v821 = vpop.f32.mrf.mxu0
        %v822 = vadd.f32 %v800, %v821
        %823 = vmatmul.f32.gmra.mxu0 %v735
        %v824 = vpop.f32.mrf.mxu0
        %v825 = vadd.f32 %v800, %v824
        %826 = vmatmul.f32.gmra.mxu0 %v736
        %v827 = vpop.f32.mrf.mxu0
        %v828 = vadd.f32 %v800, %v827
        %829 = vmatmul.f32.gmra.mxu0 %v737
        %v830 = vpop.f32.mrf.mxu0
        %v831 = vadd.f32 %v800, %v830
        %832 = vmatmul.f32.gmra.mxu0 %v738
        %v833 = vpop.f32.mrf.mxu0
        %v834 = vadd.f32 %v800, %v833
        %835 = vmatmul.f32.gmra.mxu0 %v739
        %v836 = vpop.f32.mrf.mxu0
        %v837 = vadd.f32 %v800, %v836
        %838 = vmatmul.f32.gmra.mxu0 %v740
        %v839 = vpop.f32.mrf.mxu0
        %v840 = vadd.f32 %v800, %v839
        %841 = vmatmul.f32.gmra.mxu0 %v741
        %v842 = vpop.f32.mrf.mxu0
        %v843 = vadd.f32 %v800, %v842
        %844 = vmatmul.f32.gmra.mxu0 %v742
        %v845 = vpop.f32.mrf.mxu0
        %v846 = vadd.f32 %v800, %v845
        %847 = vmatmul.f32.gmra.mxu0 %v743
        %v848 = vpop.f32.mrf.mxu0
        %v849 = vadd.f32 %v800, %v848
        %850 = vmatmul.f32.gmra.mxu0 %v744
        %v851 = vpop.f32.mrf.mxu0
        %v852 = vadd.f32 %v800, %v851
        %853 = vmatmul.f32.gmra.mxu0 %v745
        %v854 = vpop.f32.mrf.mxu0
        %v855 = vadd.f32 %v800, %v854
        %856 = vmatmul.f32.gmra.mxu0 %v746
        %v857 = vpop.f32.mrf.mxu0
        %v858 = vadd.f32 %v800, %v857
        %859 = vmatmul.f32.gmra.mxu0 %v747
        %v860 = vpop.f32.mrf.mxu0
        %v861 = vadd.f32 %v800, %v860
        %862 = vmatmul.f32.gmra.mxu0 %v748
        %v863 = vpop.f32.mrf.mxu0
        %v864 = vadd.f32 %v800, %v863
        %865 = vmatmul.f32.gmra.mxu0 %v749
        %v866 = vpop.f32.mrf.mxu0
        %v867 = vadd.f32 %v800, %v866
        %868 = vmatmul.f32.gmra.mxu0 %v750
        %v869 = vpop.f32.mrf.mxu0
        %v870 = vadd.f32 %v800, %v869
        %871 = vmatmul.f32.gmra.mxu0 %v751
        %v872 = vpop.f32.mrf.mxu0
        %v873 = vadd.f32 %v800, %v872
        %874 = vmatmul.f32.gmra.mxu0 %v752
        %v875 = vpop.f32.mrf.mxu0
        %v876 = vadd.f32 %v800, %v875
        %877 = vmatmul.f32.gmra.mxu0 %v753
        %v878 = vpop.f32.mrf.mxu0
        %v879 = vadd.f32 %v800, %v878
        %880 = vmatmul.f32.gmra.mxu0 %v754
        %v881 = vpop.f32.mrf.mxu0
        %v882 = vadd.f32 %v800, %v881
        %883 = vmatmul.f32.gmra.mxu0 %v755
        %v884 = vpop.f32.mrf.mxu0
        %v885 = vadd.f32 %v800, %v884
        %886 = vmatmul.f32.gmra.mxu0 %v756
        %v887 = vpop.f32.mrf.mxu0
        %v888 = vadd.f32 %v800, %v887
        %889 = vmatmul.f32.gmra.mxu0 %v757
        %v890 = vpop.f32.mrf.mxu0
        %v891 = vadd.f32 %v800, %v890
        %892 = vmatmul.f32.gmra.mxu0 %v758
        %v893 = vpop.f32.mrf.mxu0
        %v894 = vadd.f32 %v800, %v893
        %895 = vmatmul.f32.gmra.mxu0 %v759
        %v896 = vpop.f32.mrf.mxu0
        %v897 = vadd.f32 %v800, %v896
        %898 = vmatmul.f32.gmra.mxu0 %v760
        %v899 = vpop.f32.mrf.mxu0
        %v900 = vadd.f32 %v800, %v899
        %901 = vmatmul.f32.gmra.mxu0 %v761
        %v902 = vpop.f32.mrf.mxu0
        %v903 = vadd.f32 %v800, %v902
        %904 = vmatmul.f32.gmra.mxu0 %v762
        %v905 = vpop.f32.mrf.mxu0
        %v906 = vadd.f32 %v800, %v905
        %907 = vmatmul.f32.gmra.mxu0 %v763
        %v908 = vpop.f32.mrf.mxu0
        %v909 = vadd.f32 %v800, %v908
        %910 = vmatmul.f32.gmra.mxu0 %v764
        %v911 = vpop.f32.mrf.mxu0
        %v912 = vadd.f32 %v800, %v911
        %913 = vmatmul.f32.gmra.mxu0 %v765
        %v914 = vpop.f32.mrf.mxu0
        %v915 = vadd.f32 %v800, %v914
        %916 = vdwg.mxu0
        %917 = vmatpush.msra.mxu0 %v797
        %918 = vmatpush.msra.mxu0 %v795
        %919 = vmatpush.msra.mxu0 %v793
        %920 = vmatpush.msra.mxu0 %v791
        %921 = vmatpush.msra.mxu0 %v789
        %922 = vmatpush.msra.mxu0 %v787
        %923 = vmatpush.msra.mxu0 %v785
        %924 = vmatpush.msra.mxu0 %v783
        %925 = vmatpush.msra.mxu0 %v781
        %926 = vmatpush.msra.mxu0 %v779
        %927 = vmatpush.msra.mxu0 %v777
        %928 = vmatpush.msra.mxu0 %v775
        %929 = vmatpush.msra.mxu0 %v773
        %930 = vmatpush.msra.mxu0 %v771
        %931 = vmatpush.msra.mxu0 %v769
        %932 = vmatpush.msra.mxu0 %v767
        %933 = vmatmul.f32.gmra.mxu0 %v734
        %v934 = vpop.f32.mrf.mxu0
        %v935 = vadd.f32 %v801, %v934
        %936 = vmatmul.f32.gmra.mxu0 %v735
        %v937 = vpop.f32.mrf.mxu0
        %v938 = vadd.f32 %v801, %v937
        %939 = vmatmul.f32.gmra.mxu0 %v736
        %v940 = vpop.f32.mrf.mxu0
        %v941 = vadd.f32 %v801, %v940
        %942 = vmatmul.f32.gmra.mxu0 %v737
        %v943 = vpop.f32.mrf.mxu0
        %v944 = vadd.f32 %v801, %v943
        %945 = vmatmul.f32.gmra.mxu0 %v738
        %v946 = vpop.f32.mrf.mxu0
        %v947 = vadd.f32 %v801, %v946
        %948 = vmatmul.f32.gmra.mxu0 %v739
        %v949 = vpop.f32.mrf.mxu0
        %v950 = vadd.f32 %v801, %v949
        %951 = vmatmul.f32.gmra.mxu0 %v740
        %v952 = vpop.f32.mrf.mxu0
        %v953 = vadd.f32 %v801, %v952
        %954 = vmatmul.f32.gmra.mxu0 %v741
        %v955 = vpop.f32.mrf.mxu0
        %v956 = vadd.f32 %v801, %v955
        %957 = vmatmul.f32.gmra.mxu0 %v742
        %v958 = vpop.f32.mrf.mxu0
        %v959 = vadd.f32 %v801, %v958
        %960 = vmatmul.f32.gmra.mxu0 %v743
        %v961 = vpop.f32.mrf.mxu0
        %v962 = vadd.f32 %v801, %v961
        %963 = vmatmul.f32.gmra.mxu0 %v744
        %v964 = vpop.f32.mrf.mxu0
        %v965 = vadd.f32 %v801, %v964
        %966 = vmatmul.f32.gmra.mxu0 %v745
        %v967 = vpop.f32.mrf.mxu0
        %v968 = vadd.f32 %v801, %v967
        %969 = vmatmul.f32.gmra.mxu0 %v746
        %v970 = vpop.f32.mrf.mxu0
        %v971 = vadd.f32 %v801, %v970
        %972 = vmatmul.f32.gmra.mxu0 %v747
        %v973 = vpop.f32.mrf.mxu0
        %v974 = vadd.f32 %v801, %v973
        %975 = vmatmul.f32.gmra.mxu0 %v748
        %v976 = vpop.f32.mrf.mxu0
        %v977 = vadd.f32 %v801, %v976
        %978 = vmatmul.f32.gmra.mxu0 %v749
        %v979 = vpop.f32.mrf.mxu0
        %v980 = vadd.f32 %v801, %v979
        %981 = vmatmul.f32.gmra.mxu0 %v750
        %v982 = vpop.f32.mrf.mxu0
        %v983 = vadd.f32 %v801, %v982
        %984 = vmatmul.f32.gmra.mxu0 %v751
        %v985 = vpop.f32.mrf.mxu0
        %v986 = vadd.f32 %v801, %v985
        %987 = vmatmul.f32.gmra.mxu0 %v752
        %v988 = vpop.f32.mrf.mxu0
        %v989 = vadd.f32 %v801, %v988
        %990 = vmatmul.f32.gmra.mxu0 %v753
        %v991 = vpop.f32.mrf.mxu0
        %v992 = vadd.f32 %v801, %v991
        %993 = vmatmul.f32.gmra.mxu0 %v754
        %v994 = vpop.f32.mrf.mxu0
        %v995 = vadd.f32 %v801, %v994
        %996 = vmatmul.f32.gmra.mxu0 %v755
        %v997 = vpop.f32.mrf.mxu0
        %v998 = vadd.f32 %v801, %v997
        %999 = vmatmul.f32.gmra.mxu0 %v756
        %v1000 = vpop.f32.mrf.mxu0
        %v1001 = vadd.f32 %v801, %v1000
        %1002 = vmatmul.f32.gmra.mxu0 %v757
        %v1003 = vpop.f32.mrf.mxu0
        %v1004 = vadd.f32 %v801, %v1003
        %1005 = vmatmul.f32.gmra.mxu0 %v758
        %v1006 = vpop.f32.mrf.mxu0
        %v1007 = vadd.f32 %v801, %v1006
        %1008 = vmatmul.f32.gmra.mxu0 %v759
        %v1009 = vpop.f32.mrf.mxu0
        %v1010 = vadd.f32 %v801, %v1009
        %1011 = vmatmul.f32.gmra.mxu0 %v760
        %v1012 = vpop.f32.mrf.mxu0
        %v1013 = vadd.f32 %v801, %v1012
        %1014 = vmatmul.f32.gmra.mxu0 %v761
        %v1015 = vpop.f32.mrf.mxu0
        %v1016 = vadd.f32 %v801, %v1015
        %1017 = vmatmul.f32.gmra.mxu0 %v762
        %v1018 = vpop.f32.mrf.mxu0
        %v1019 = vadd.f32 %v801, %v1018
        %1020 = vmatmul.f32.gmra.mxu0 %v763
        %v1021 = vpop.f32.mrf.mxu0
        %v1022 = vadd.f32 %v801, %v1021
        %1023 = vmatmul.f32.gmra.mxu0 %v764
        %v1024 = vpop.f32.mrf.mxu0
        %v1025 = vadd.f32 %v801, %v1024
        %1026 = vmatmul.f32.gmra.mxu0 %v765
        %v1027 = vpop.f32.mrf.mxu0
        %v1028 = vadd.f32 %v801, %v1027
        %1029 = vdwg.mxu0
        %1030 = vst [vmem:[%s393] sm:$0xff] %v822
        %1031 = vst [vmem:[%s393 + $0x8] sm:$0xff] %v825
        %1032 = vst [vmem:[%s393 + $0x10] sm:$0xff] %v828
        %1033 = vst [vmem:[%s393 + $0x18] sm:$0xff] %v831
        %1034 = vst [vmem:[%s393 + $0x20] sm:$0xff] %v834
        %1035 = vst [vmem:[%s393 + $0x28] sm:$0xff] %v837
        %1036 = vst [vmem:[%s393 + $0x30] sm:$0xff] %v840
        %1037 = vst [vmem:[%s393 + $0x38] sm:$0xff] %v843
        %1038 = vst [vmem:[%s393 + $0x40] sm:$0xff] %v846
        %1039 = vst [vmem:[%s393 + $0x48] sm:$0xff] %v849
        %1040 = vst [vmem:[%s393 + $0x50] sm:$0xff] %v852
        %1041 = vst [vmem:[%s393 + $0x58] sm:$0xff] %v855
        %1042 = vst [vmem:[%s393 + $0x60] sm:$0xff] %v858
        %1043 = vst [vmem:[%s393 + $0x68] sm:$0xff] %v861
        %1044 = vst [vmem:[%s393 + $0x70] sm:$0xff] %v864
        %1045 = vst [vmem:[%s393 + $0x78] sm:$0xff] %v867
        %1046 = vst [vmem:[%s393 + $0x80] sm:$0xff] %v870
        %1047 = vst [vmem:[%s393 + $0x88] sm:$0xff] %v873
        %1048 = vst [vmem:[%s393 + $0x90] sm:$0xff] %v876
        %1049 = vst [vmem:[%s393 + $0x98] sm:$0xff] %v879
        %1050 = vst [vmem:[%s393 + $0xa0] sm:$0xff] %v882
        %1051 = vst [vmem:[%s393 + $0xa8] sm:$0xff] %v885
        %1052 = vst [vmem:[%s393 + $0xb0] sm:$0xff] %v888
        %1053 = vst [vmem:[%s393 + $0xb8] sm:$0xff] %v891
        %1054 = vst [vmem:[%s393 + $0xc0] sm:$0xff] %v894
        %1055 = vst [vmem:[%s393 + $0xc8] sm:$0xff] %v897
        %1056 = vst [vmem:[%s393 + $0xd0] sm:$0xff] %v900
        %1057 = vst [vmem:[%s393 + $0xd8] sm:$0xff] %v903
        %1058 = vst [vmem:[%s393 + $0xe0] sm:$0xff] %v906
        %1059 = vst [vmem:[%s393 + $0xe8] sm:$0xff] %v909
        %1060 = vst [vmem:[%s393 + $0xf0] sm:$0xff] %v912
        %1061 = vst [vmem:[%s393 + $0xf8] sm:$0xff] %v915
        %v1062 = vtanh.pop %v935
        %v1063 = vtanh.pop %v938
        %v1064 = vtanh.pop %v941
        %v1065 = vtanh.pop %v944
        %v1066 = vtanh.pop %v947
        %v1067 = vtanh.pop %v950
        %v1068 = vtanh.pop %v953
        %v1069 = vtanh.pop %v956
        %v1070 = vtanh.pop %v959
        %v1071 = vtanh.pop %v962
        %v1072 = vtanh.pop %v965
        %v1073 = vtanh.pop %v968
        %v1074 = vtanh.pop %v971
        %v1075 = vtanh.pop %v974
        %v1076 = vtanh.pop %v977
        %v1077 = vtanh.pop %v980
        %v1078 = vtanh.pop %v983
        %v1079 = vtanh.pop %v986
        %v1080 = vtanh.pop %v989
        %v1081 = vtanh.pop %v992
        %v1082 = vtanh.pop %v995
        %v1083 = vtanh.pop %v998
        %v1084 = vtanh.pop %v1001
        %v1085 = vtanh.pop %v1004
        %v1086 = vtanh.pop %v1007
        %v1087 = vtanh.pop %v1010
        %v1088 = vtanh.pop %v1013
        %v1089 = vtanh.pop %v1016
        %v1090 = vtanh.pop %v1019
        %v1091 = vtanh.pop %v1022
        %v1092 = vtanh.pop %v1025
        %v1093 = vtanh.pop %v1028
        %v1094 = vadd.f32 %v1062, 1.0
        %v1095 = vadd.f32 %v1063, 1.0
        %v1096 = vadd.f32 %v1064, 1.0
        %v1097 = vadd.f32 %v1065, 1.0
        %v1098 = vadd.f32 %v1066, 1.0
        %v1099 = vadd.f32 %v1067, 1.0
        %v1100 = vadd.f32 %v1068, 1.0
        %v1101 = vadd.f32 %v1069, 1.0
        %v1102 = vadd.f32 %v1070, 1.0
        %v1103 = vadd.f32 %v1071, 1.0
        %v1104 = vadd.f32 %v1072, 1.0
        %v1105 = vadd.f32 %v1073, 1.0
        %v1106 = vadd.f32 %v1074, 1.0
        %v1107 = vadd.f32 %v1075, 1.0
        %v1108 = vadd.f32 %v1076, 1.0
        %v1109 = vadd.f32 %v1077, 1.0
        %v1110 = vadd.f32 %v1078, 1.0
        %v1111 = vadd.f32 %v1079, 1.0
        %v1112 = vadd.f32 %v1080, 1.0
        %v1113 = vadd.f32 %v1081, 1.0
        %v1114 = vadd.f32 %v1082, 1.0
        %v1115 = vadd.f32 %v1083, 1.0
        %v1116 = vadd.f32 %v1084, 1.0
        %v1117 = vadd.f32 %v1085, 1.0
        %v1118 = vadd.f32 %v1086, 1.0
        %v1119 = vadd.f32 %v1087, 1.0
        %v1120 = vadd.f32 %v1088, 1.0
        %v1121 = vadd.f32 %v1089, 1.0
        %v1122 = vadd.f32 %v1090, 1.0
        %v1123 = vadd.f32 %v1091, 1.0
        %v1124 = vadd.f32 %v1092, 1.0
        %v1125 = vadd.f32 %v1093, 1.0
        %v1126 = vmul.f32 %v1094, 22.0
        %v1127 = vmul.f32 %v1095, 22.0
        %v1128 = vmul.f32 %v1096, 22.0
        %v1129 = vmul.f32 %v1097, 22.0
        %v1130 = vmul.f32 %v1098, 22.0
        %v1131 = vmul.f32 %v1099, 22.0
        %v1132 = vmul.f32 %v1100, 22.0
        %v1133 = vmul.f32 %v1101, 22.0
        %v1134 = vmul.f32 %v1102, 22.0
        %v1135 = vmul.f32 %v1103, 22.0
        %v1136 = vmul.f32 %v1104, 22.0
        %v1137 = vmul.f32 %v1105, 22.0
        %v1138 = vmul.f32 %v1106, 22.0
        %v1139 = vmul.f32 %v1107, 22.0
        %v1140 = vmul.f32 %v1108, 22.0
        %v1141 = vmul.f32 %v1109, 22.0
        %v1142 = vmul.f32 %v1110, 22.0
        %v1143 = vmul.f32 %v1111, 22.0
        %v1144 = vmul.f32 %v1112, 22.0
        %v1145 = vmul.f32 %v1113, 22.0
        %v1146 = vmul.f32 %v1114, 22.0
        %v1147 = vmul.f32 %v1115, 22.0
        %v1148 = vmul.f32 %v1116, 22.0
        %v1149 = vmul.f32 %v1117, 22.0
        %v1150 = vmul.f32 %v1118, 22.0
        %v1151 = vmul.f32 %v1119, 22.0
        %v1152 = vmul.f32 %v1120, 22.0
        %v1153 = vmul.f32 %v1121, 22.0
        %v1154 = vmul.f32 %v1122, 22.0
        %v1155 = vmul.f32 %v1123, 22.0
        %v1156 = vmul.f32 %v1124, 22.0
        %v1157 = vmul.f32 %v1125, 22.0
        %v1158 = vmul.f32 %v1126, 0.5
        %v1159 = vmul.f32 %v1127, 0.5
        %v1160 = vmul.f32 %v1128, 0.5
        %v1161 = vmul.f32 %v1129, 0.5
        %v1162 = vmul.f32 %v1130, 0.5
        %v1163 = vmul.f32 %v1131, 0.5
        %v1164 = vmul.f32 %v1132, 0.5
        %v1165 = vmul.f32 %v1133, 0.5
        %v1166 = vmul.f32 %v1134, 0.5
        %v1167 = vmul.f32 %v1135, 0.5
        %v1168 = vmul.f32 %v1136, 0.5
        %v1169 = vmul.f32 %v1137, 0.5
        %v1170 = vmul.f32 %v1138, 0.5
        %v1171 = vmul.f32 %v1139, 0.5
        %v1172 = vmul.f32 %v1140, 0.5
        %v1173 = vmul.f32 %v1141, 0.5
        %v1174 = vmul.f32 %v1142, 0.5
        %v1175 = vmul.f32 %v1143, 0.5
        %v1176 = vmul.f32 %v1144, 0.5
        %v1177 = vmul.f32 %v1145, 0.5
        %v1178 = vmul.f32 %v1146, 0.5
        %v1179 = vmul.f32 %v1147, 0.5
        %v1180 = vmul.f32 %v1148, 0.5
        %v1181 = vmul.f32 %v1149, 0.5
        %v1182 = vmul.f32 %v1150, 0.5
        %v1183 = vmul.f32 %v1151, 0.5
        %v1184 = vmul.f32 %v1152, 0.5
        %v1185 = vmul.f32 %v1153, 0.5
        %v1186 = vmul.f32 %v1154, 0.5
        %v1187 = vmul.f32 %v1155, 0.5
        %v1188 = vmul.f32 %v1156, 0.5
        %v1189 = vmul.f32 %v1157, 0.5
        %v1190 = vadd.f32 %v1158, -20.0
        %v1191 = vadd.f32 %v1159, -20.0
        %v1192 = vadd.f32 %v1160, -20.0
        %v1193 = vadd.f32 %v1161, -20.0
        %v1194 = vadd.f32 %v1162, -20.0
        %v1195 = vadd.f32 %v1163, -20.0
        %v1196 = vadd.f32 %v1164, -20.0
        %v1197 = vadd.f32 %v1165, -20.0
        %v1198 = vadd.f32 %v1166, -20.0
        %v1199 = vadd.f32 %v1167, -20.0
        %v1200 = vadd.f32 %v1168, -20.0
        %v1201 = vadd.f32 %v1169, -20.0
        %v1202 = vadd.f32 %v1170, -20.0
        %v1203 = vadd.f32 %v1171, -20.0
        %v1204 = vadd.f32 %v1172, -20.0
        %v1205 = vadd.f32 %v1173, -20.0
        %v1206 = vadd.f32 %v1174, -20.0
        %v1207 = vadd.f32 %v1175, -20.0
        %v1208 = vadd.f32 %v1176, -20.0
        %v1209 = vadd.f32 %v1177, -20.0
        %v1210 = vadd.f32 %v1178, -20.0
        %v1211 = vadd.f32 %v1179, -20.0
        %v1212 = vadd.f32 %v1180, -20.0
        %v1213 = vadd.f32 %v1181, -20.0
        %v1214 = vadd.f32 %v1182, -20.0
        %v1215 = vadd.f32 %v1183, -20.0
        %v1216 = vadd.f32 %v1184, -20.0
        %v1217 = vadd.f32 %v1185, -20.0
        %v1218 = vadd.f32 %v1186, -20.0
        %v1219 = vadd.f32 %v1187, -20.0
        %v1220 = vadd.f32 %v1188, -20.0
        %v1221 = vadd.f32 %v1189, -20.0
        %1222 = vst [vmem:[%s400] sm:$0xff] %v1190
        %1223 = vst [vmem:[%s400 + $0x8] sm:$0xff] %v1191
        %1224 = vst [vmem:[%s400 + $0x10] sm:$0xff] %v1192
        %1225 = vst [vmem:[%s400 + $0x18] sm:$0xff] %v1193
        %1226 = vst [vmem:[%s400 + $0x20] sm:$0xff] %v1194
        %1227 = vst [vmem:[%s400 + $0x28] sm:$0xff] %v1195
        %1228 = vst [vmem:[%s400 + $0x30] sm:$0xff] %v1196
        %1229 = vst [vmem:[%s400 + $0x38] sm:$0xff] %v1197
        %1230 = vst [vmem:[%s400 + $0x40] sm:$0xff] %v1198
        %1231 = vst [vmem:[%s400 + $0x48] sm:$0xff] %v1199
        %1232 = vst [vmem:[%s400 + $0x50] sm:$0xff] %v1200
        %1233 = vst [vmem:[%s400 + $0x58] sm:$0xff] %v1201
        %1234 = vst [vmem:[%s400 + $0x60] sm:$0xff] %v1202
        %1235 = vst [vmem:[%s400 + $0x68] sm:$0xff] %v1203
        %1236 = vst [vmem:[%s400 + $0x70] sm:$0xff] %v1204
        %1237 = vst [vmem:[%s400 + $0x78] sm:$0xff] %v1205
        %1238 = vst [vmem:[%s400 + $0x80] sm:$0xff] %v1206
        %1239 = vst [vmem:[%s400 + $0x88] sm:$0xff] %v1207
        %1240 = vst [vmem:[%s400 + $0x90] sm:$0xff] %v1208
        %1241 = vst [vmem:[%s400 + $0x98] sm:$0xff] %v1209
        %1242 = vst [vmem:[%s400 + $0xa0] sm:$0xff] %v1210
        %1243 = vst [vmem:[%s400 + $0xa8] sm:$0xff] %v1211
        %1244 = vst [vmem:[%s400 + $0xb0] sm:$0xff] %v1212
        %1245 = vst [vmem:[%s400 + $0xb8] sm:$0xff] %v1213
        %1246 = vst [vmem:[%s400 + $0xc0] sm:$0xff] %v1214
        %1247 = vst [vmem:[%s400 + $0xc8] sm:$0xff] %v1215
        %1248 = vst [vmem:[%s400 + $0xd0] sm:$0xff] %v1216
        %1249 = vst [vmem:[%s400 + $0xd8] sm:$0xff] %v1217
        %1250 = vst [vmem:[%s400 + $0xe0] sm:$0xff] %v1218
        %1251 = vst [vmem:[%s400 + $0xe8] sm:$0xff] %v1219
        %1252 = vst [vmem:[%s400 + $0xf0] sm:$0xff] %v1220
        %1253 = vst [vmem:[%s400 + $0xf8] sm:$0xff] %v1221
        %s1254 = sand.u32 %s191, 1
        %s1255 = scalar_lea.sflag [#allocation4], %s1254
        %s1256 = sand.u32 %s191, 1
        %s1257 = smul.addr %s1256, 256
        %s1258 = scalar_lea.vmem [#allocation11], %s1257
        %s1259 = sand.u32 %s217, 1
        %s1260 = scalar_lea.sflag [#allocation13], %s1259
        %s1261 = sand.u32 %s217, 1
        %s1262 = smul.addr %s1261, 256
        %s1263 = scalar_lea.vmem [#allocation12], %s1262
        // Predicated region
        $region69: #{tpu_custom_call.1} parent=47 // pred_check
          %p1264 = pneg %p201
        $region70: #{tpu_custom_call.1} parent=47 // pred_check_branch
          %1266 = sbr.rel (%p1264) target = $region72
        $region71: #{tpu_custom_call.1} parent=47 // pred_region
          %s1267 = smul.u32 32, %s31
          %1269 = vsyncadd %s1255, 0
          %s1270 = smul.addr %s1267, 8
          %s1271 = scalar_lea.hbm %s7, %s1270
          %s1272 = sshll.u32 %s1258, 4
          %s1273 = int_to_ptr.vmem [resolvable:$true] %s1272
          %s1274 = sshll.u32 %s1271, 4
          %s1275 = int_to_ptr.hbm [resolvable:$true] %s1274
          %1280 = dma.vmem_to_hbm [thread:$0]  %s1273, 4096, %s1275, %s1255, 128, 128, 8
        $region72: #{tpu_custom_call.1} parent=47 // pred_fallthru
          _
        // Predicated region
        $region73: #{tpu_custom_call.1} parent=47 // pred_check
          %p1281 = pneg %p227
        $region74: #{tpu_custom_call.1} parent=47 // pred_check_branch
          %1283 = sbr.rel (%p1281) target = $region76
        $region75: #{tpu_custom_call.1} parent=47 // pred_region
          %s1284 = smul.u32 32, %s31
          %1286 = vsyncadd %s1260, 0
          %s1287 = smul.addr %s1284, 8
          %s1288 = scalar_lea.hbm %s8, %s1287
          %s1289 = sshll.u32 %s1263, 4
          %s1290 = int_to_ptr.vmem [resolvable:$true] %s1289
          %s1291 = sshll.u32 %s1288, 4
          %s1292 = int_to_ptr.hbm [resolvable:$true] %s1291
          %1297 = dma.vmem_to_hbm [thread:$0]  %s1290, 4096, %s1292, %s1260, 128, 128, 8
        $region76: #{tpu_custom_call.1} parent=47 // pred_fallthru
          _
      $region48: #{tpu_custom_call.1} parent=5 // pred_fallthru
        _
      %p1298 = scmp.le.s32.totalorder 2, %s26
      // Predicated region
      $region77: #{tpu_custom_call.1} parent=5 // pred_check
        %p1299 = pneg %p1298
      $region78: #{tpu_custom_call.1} parent=5 // pred_check_branch
        %1301 = sbr.rel (%p1299) target = $region80
      $region79: #{tpu_custom_call.1} parent=5 // pred_region
        %s1302 = ssub.s32 %s26, 2
        // Predicated region
        $region81: #{tpu_custom_call.1} parent=79 // pred_check
          %p1303 = pneg %p207
        $region82: #{tpu_custom_call.1} parent=79 // pred_check_branch
          %1305 = sbr.rel (%p1303) target = $region84
        $region83: #{tpu_custom_call.1} parent=79 // pred_region
          %s1306 = sand.u32 %s192, 1
          %s1307 = scalar_lea.sflag [#allocation4], %s1306
          %s1308 = sand.u32 %s192, 1
          %s1309 = smul.addr %s1308, 256
          %s1310 = scalar_lea.vmem [#allocation11], %s1309
          %1312 = dma.done %s1307, 4096
        $region84: #{tpu_custom_call.1} parent=79 // pred_fallthru
          _
        // Predicated region
        $region85: #{tpu_custom_call.1} parent=79 // pred_check
          %p1313 = pneg %p233
        $region86: #{tpu_custom_call.1} parent=79 // pred_check_branch
          %1315 = sbr.rel (%p1313) target = $region88
        $region87: #{tpu_custom_call.1} parent=79 // pred_region
          %s1316 = sand.u32 %s218, 1
          %s1317 = scalar_lea.sflag [#allocation13], %s1316
          %s1318 = sand.u32 %s218, 1
          %s1319 = smul.addr %s1318, 256
          %s1320 = scalar_lea.vmem [#allocation12], %s1319
          %1322 = dma.done %s1317, 4096
        $region88: #{tpu_custom_call.1} parent=79 // pred_fallthru
          _
      $region80: #{tpu_custom_call.1} parent=5 // pred_fallthru
        _
    $region6: #{tpu_custom_call.1} parent=1 // loop_footer
      %s30 = sadd.s32 1, %s26
    $region7: #{tpu_custom_call.1} parent=1 // loop_footer_branch
      %25 = sbr.rel target = $region3
    $region8: #{tpu_custom_call.1} parent=1 // loop_exit
      _
    %1323 = vsyncpa [#allocation3], 1
    %s1324 = scalar_lea.sflag [#allocation3], 1
    %1325 = vsyncpa %s1324, 1
    %1326 = vsyncpa [#allocation6], 1
    %1327 = vsyncpa [#allocation9], 1
    %1328 = vsyncpa [#allocation4], 1
    %s1329 = scalar_lea.sflag [#allocation4], 1
    %1330 = vsyncpa %s1329, 1
    %1331 = vsyncpa [#allocation13], 1
    %s1332 = scalar_lea.sflag [#allocation13], 1
    %1333 = vsyncpa %s1332, 1

</llo_original>
